<compile_context>
chip_gen: v6e
topology: v6e:2x2x1
jax: 0.10.0
libtpu: 0.0.40
codegen_flags: <defaults>
</compile_context>

<pallas_src>
import functools

import numpy as np
import jax
import jax.numpy as jnp
from jax.experimental import pallas as pl
from jax.experimental.pallas import tpu as pltpu

C1, C2, C3 = 16, 32, 64  # conv channel counts of the module


# ---------------------------------------------------------------------------
# Fused forward kernel
# ---------------------------------------------------------------------------
def _fused_forward_kernel(obs_ref, w1_ref, b1_ref, w2_ref, b2_ref,
                          w3_ref, b3_ref, hw1_ref, hb1_ref, hw2_ref, hb2_ref,
                          out_ref, *, dims):
    (bt, KC, H1, W1, Hp, H2, W2, H3, W3, A) = dims
    f32 = jnp.float32

    def conv2x2(x, w_ref, b_ref, Hout, K, N):
        # x: (bt, Hout+1, K); w_ref: (2, K, N) with the kernel-column offset dw
        # folded into block-diagonal placement. Batch is folded into the matmul
        # M dimension -> two MXU matmuls per layer regardless of bt.
        a0 = x[:, 0:Hout, :].reshape(bt * Hout, K)
        a1 = x[:, 1:Hout + 1, :].reshape(bt * Hout, K)
        acc = jnp.dot(a0, w_ref[0], preferred_element_type=f32)
        acc = acc + jnp.dot(a1, w_ref[1], preferred_element_type=f32)
        return jnp.maximum(acc + b_ref[...], 0.0).reshape(bt, Hout, N)

    obs = obs_ref[0]                                               # (bt, n, m*Cin)

    # ---- conv1 (2x2 valid) + ReLU
    h1 = conv2x2(obs, w1_ref, b1_ref, H1, KC, W1 * C1)             # (bt, H1, W1*16)

    # ---- 2x2 / stride-2 max pool (floor), vectorized over batch & width.
    rows = [jnp.maximum(h1[:, 2 * i:2 * i + 1, :], h1[:, 2 * i + 1:2 * i + 2, :])
            for i in range(Hp)]
    rowmax = jnp.concatenate(rows, axis=1)                         # (bt, Hp, W1*16)
    # Horizontal pair max via one shifted lane slice: pooled column j ends up at
    # lane block 2*j (non-compacted). conv2's packed weight only has non-zero
    # rows at those even blocks, so the odd "garbage" blocks contribute 0.
    p1 = jnp.maximum(rowmax[:, :, 0:(W1 - 1) * C1],
                     rowmax[:, :, C1:W1 * C1])                     # (bt, Hp, (W1-1)*16)

    # ---- conv2 + ReLU, conv3 + ReLU
    h2 = conv2x2(p1, w2_ref, b2_ref, H2, (W1 - 1) * C1, W2 * C2)   # (bt, H2, W2*32)
    h3 = conv2x2(h2, w3_ref, b3_ref, H3, W2 * C2, W3 * C3)         # (bt, H3, W3*64)

    # For 7x7 inputs H3 = W3 = 1, so this is a free squeeze: the conv3
    # activation IS the (bt, 64) embedding.
    emb = h3.reshape(bt, H3 * W3 * C3)                             # (bt, E)

    # ---- fused actor + critic heads (2 MXU matmuls) + stable log-softmax
    hidden = jnp.tanh(jnp.dot(emb, hw1_ref[...], preferred_element_type=f32)
                      + hb1_ref[...])                              # (bt, 128)
    out = jnp.dot(hidden, hw2_ref[...], preferred_element_type=f32) + hb2_ref[...]
    logits = out[:, 0:A]
    mmax = jnp.max(logits, axis=1, keepdims=True)
    lse = mmax + jnp.log(jnp.sum(jnp.exp(logits - mmax), axis=1, keepdims=True))
    out_ref[0] = jnp.concatenate([logits - lse, out[:, A:A + 1]], axis=1)


# ---------------------------------------------------------------------------
# Parameter construction / packing
# ---------------------------------------------------------------------------
def init_params(key, in_channels, action_space, embedding_size):
    ks = jax.random.split(key, 14)

    def w(k, shape, fan_in):
        return jax.random.normal(k, shape, jnp.float32) / jnp.sqrt(float(fan_in))

    return {
        # conv weights: (kh, kw, Cin, Cout) (== PyTorch (Cout,Cin,kh,kw) permuted)
        "conv1_w": w(ks[0], (2, 2, in_channels, C1), 4 * in_channels),
        "conv1_b": w(ks[1], (C1,), 4 * in_channels),
        "conv2_w": w(ks[2], (2, 2, C1, C2), 4 * C1),
        "conv2_b": w(ks[3], (C2,), 4 * C1),
        "conv3_w": w(ks[4], (2, 2, C2, C3), 4 * C2),
        "conv3_b": w(ks[5], (C3,), 4 * C2),
        # linear weights: (in, out)
        "actor_w1": w(ks[6], (embedding_size, 64), embedding_size),
        "actor_b1": w(ks[7], (64,), embedding_size),
        "actor_w2": w(ks[8], (64, action_space), 64),
        "actor_b2": w(ks[9], (action_space,), 64),
        "critic_w1": w(ks[10], (embedding_size, 64), embedding_size),
        "critic_b1": w(ks[11], (64,), embedding_size),
        "critic_w2": w(ks[12], (64, 1), 64),
        "critic_b2": w(ks[13], (1,), 64),
    }


def pack_params(p, n, m, in_channels, action_space):
    """One-time repack of module params into fused-kernel constants."""
    H1, W1 = n - 1, m - 1
    Hp, Wp = H1 // 2, W1 // 2
    H2, W2 = Hp - 1, Wp - 1
    H3, W3 = H2 - 1, W2 - 1
    E = H3 * W3 * C3
    A = action_space

    def conv_pack(w, Wout, Kwidth, col_stride):
        # (2,2,Cin,Cout) -> (2, Kwidth, Wout*Cout): for each dh, place w[dh,dw]
        # so that output width-block j reads input width-block (j+dw)*col_stride.
        w_np = np.asarray(w, dtype=np.float32)
        Cin, Cout = w_np.shape[2], w_np.shape[3]
        out = np.zeros((2, Kwidth, Wout * Cout), np.float32)
        for dh in range(2):
            for dw in range(2):
                for j in range(Wout):
                    r = (j + dw) * col_stride * Cin
                    out[dh, r:r + Cin, j * Cout:(j + 1) * Cout] += w_np[dh, dw]
        return jnp.asarray(out)

    def conv_bias(b, Wout):
        return jnp.tile(b, (Wout,)).reshape(1, -1)

    # head layer 1: concat actor/critic; permute rows so the kernel's (h,w,c)
    # flatten matches PyTorch's NCHW flatten (identity when H3=W3=1).
    w1cat = jnp.concatenate([p["actor_w1"], p["critic_w1"]], axis=1)      # (E, 128)
    perm = np.zeros((E,), dtype=np.int32)
    for h in range(H3):
        for w_ in range(W3):
            for c in range(C3):
                perm[h * W3 * C3 + w_ * C3 + c] = c * H3 * W3 + h * W3 + w_
    hw1 = w1cat[jnp.asarray(perm)]                                        # (E, 128)
    hb1 = jnp.concatenate([p["actor_b1"], p["critic_b1"]]).reshape(1, 128)

    # head layer 2: block-diagonal (128, A+1)
    hw2 = jnp.zeros((128, A + 1), jnp.float32)
    hw2 = hw2.at[:64, :A].set(p["actor_w2"])
    hw2 = hw2.at[64:, A:].set(p["critic_w2"])
    hb2 = jnp.concatenate([p["actor_b2"], p["critic_b2"]]).reshape(1, A + 1)

    return {
        "w1": conv_pack(p["conv1_w"], W1, m * in_channels, 1),
        "b1": conv_bias(p["conv1_b"], W1),
        "w2": conv_pack(p["conv2_w"], W2, (W1 - 1) * C1, 2),   # non-compacted pool
        "b2": conv_bias(p["conv2_b"], W2),
        "w3": conv_pack(p["conv3_w"], W3, W2 * C2, 1),
        "b3": conv_bias(p["conv3_b"], W3),
        "hw1": hw1, "hb1": hb1, "hw2": hw2, "hb2": hb2,
    }


# ---------------------------------------------------------------------------
# Forward
# ---------------------------------------------------------------------------
def communication_net_forward(packed, obs, *, n, m, in_channels, action_space):
    """obs: (B, n, m, C) float32 (same layout the PyTorch module receives).

    Returns (log_probs, value): log_probs == F.log_softmax(actor(emb), dim=1)
    (the Categorical's logits), value shape (B,).
    """
    B = obs.shape[0]
    A = action_space
    H1, W1 = n - 1, m - 1
    Hp, Wp = H1 // 2, W1 // 2
    H2, W2 = Hp - 1, Wp - 1
    H3, W3 = H2 - 1, W2 - 1
    KC = m * in_channels

    # Batch tiling: size bt so bt*H1 approaches the 256-row MXU, keep >=2 grid
    # steps so both v7x TensorCores get work, pad the batch and trim the tail.
    bt_cap = max(8, (256 // max(H1, 1)) // 8 * 8)
    if B <= 1:
        bt, g = max(B, 1), 1
    else:
        g = max(2, pl.cdiv(B, bt_cap))
        bt = pl.cdiv(B, g)
        g = pl.cdiv(B, bt)
    Bp = g * bt

    obs2d = obs.astype(jnp.float32).reshape(B, n, KC)          # free reshape
    if Bp != B:
        obs2d = jnp.pad(obs2d, ((0, Bp - B), (0, 0), (0, 0)))
    obs4d = obs2d.reshape(g, bt, n, KC)

    dims = (bt, KC, H1, W1, Hp, H2, W2, H3, W3, A)

    def full_spec(arr):
        nd = arr.ndim
        return pl.BlockSpec(tuple(int(s) for s in arr.shape), lambda *_: (0,) * nd)

    weight_names = ["w1", "b1", "w2", "b2", "w3", "b3", "hw1", "hb1", "hw2", "hb2"]
    in_specs = [pl.BlockSpec((1, bt, n, KC), lambda i: (i, 0, 0, 0))]
    in_specs += [full_spec(packed[k]) for k in weight_names]

    out = pl.pallas_call(
        functools.partial(_fused_forward_kernel, dims=dims),
        out_shape=jax.ShapeDtypeStruct((g, bt, A + 1), jnp.float32),
        grid=(g,),
        in_specs=in_specs,
        out_specs=pl.BlockSpec((1, bt, A + 1), lambda i: (i, 0, 0)),
        compiler_params=pltpu.CompilerParams(
            dimension_semantics=("parallel",)),
    )(obs4d, *[packed[k] for k in weight_names])

    out = out.reshape(Bp, A + 1)[:B]
    return out[:, :A], out[:, A]


# ---------------------------------------------------------------------------
# Pure-JAX reference (for a correctness sanity check)
# ---------------------------------------------------------------------------
def reference_forward(p, obs, action_space):
    hi = jax.lax.Precision.HIGHEST

    def conv(x, w, b):
        y = jax.lax.conv_general_dilated(
            x, w, (1, 1), "VALID",
            dimension_numbers=("NHWC", "HWIO", "NHWC"), precision=hi)
        return jax.nn.relu(y + b)

    h = conv(obs, p["conv1_w"], p["conv1_b"])
    h = jax.lax.reduce_window(h, -jnp.inf, jax.lax.max,
                              (1, 2, 2, 1), (1, 2, 2, 1), "VALID")
    h = conv(h, p["conv2_w"], p["conv2_b"])
    h = conv(h, p["conv3_w"], p["conv3_b"])
    emb = jnp.transpose(h, (0, 3, 1, 2)).reshape(h.shape[0], -1)   # NCHW flatten
    logits = jnp.dot(jnp.tanh(jnp.dot(emb, p["actor_w1"], precision=hi) + p["actor_b1"]),
                     p["actor_w2"], precision=hi) + p["actor_b2"]
    logp = jax.nn.log_softmax(logits, axis=1)
    v = jnp.dot(jnp.tanh(jnp.dot(emb, p["critic_w1"], precision=hi) + p["critic_b1"]),
                p["critic_w2"], precision=hi) + p["critic_b2"]
    return logp, v[:, 0]


if __name__ == "__main__":
    # obs_space['image'] = (7, 7, 3)  (MiniGrid-style), action_space = 7
    n, m, C = 7, 7, 3
    action_space = 7
    batch = 2
    embedding_size = ((n - 1) // 2 - 2) * ((m - 1) // 2 - 2) * 64   # = 64

    key = jax.random.PRNGKey(0)
    pkey, okey = jax.random.split(key)
    params = init_params(pkey, C, action_space, embedding_size)
    obs = jax.random.normal(okey, (batch, n, m, C), jnp.float32)

    packed = pack_params(params, n, m, C, action_space)

    fwd = jax.jit(functools.partial(communication_net_forward,
                                    n=n, m=m, in_channels=C,
                                    action_space=action_space))
    log_probs, value = fwd(packed, obs)
    jax.block_until_ready((log_probs, value))

    assert log_probs.shape == (batch, action_space)
    assert value.shape == (batch,)
    # Categorical log-probs must normalize to 1.
    assert bool(jnp.allclose(jnp.sum(jnp.exp(log_probs), axis=1), 1.0, atol=1e-5))

    # Numerical parity vs. plain-JAX reference of the PyTorch module.
    ref_logp, ref_val = reference_forward(params, obs, action_space)
    assert bool(jnp.allclose(log_probs, ref_logp, atol=2e-2, rtol=2e-2))
    assert bool(jnp.allclose(value, ref_val, atol=2e-2, rtol=2e-2))

    print("KERNEL_OK")
</pallas_src>

<mosaic_0001>
module attributes {stable_mosaic.version = 11 : i64} {
  func.func @_fused_forward_kernel(%arg0: i32, %arg1: memref<1x1x7x21xf32, #tpu.memory_space<vmem>>, %arg2: memref<2x21x96xf32, #tpu.memory_space<vmem>>, %arg3: memref<1x96xf32, #tpu.memory_space<vmem>>, %arg4: memref<2x80x64xf32, #tpu.memory_space<vmem>>, %arg5: memref<1x64xf32, #tpu.memory_space<vmem>>, %arg6: memref<2x64x64xf32, #tpu.memory_space<vmem>>, %arg7: memref<1x64xf32, #tpu.memory_space<vmem>>, %arg8: memref<64x128xf32, #tpu.memory_space<vmem>>, %arg9: memref<1x128xf32, #tpu.memory_space<vmem>>, %arg10: memref<128x8xf32, #tpu.memory_space<vmem>>, %arg11: memref<1x8xf32, #tpu.memory_space<vmem>>, %arg12: memref<1x1x8xf32, #tpu.memory_space<vmem>>) attributes {dimension_semantics = [#tpu.dimension_semantics<parallel>], iteration_bounds = array<i64: 2>, scalar_prefetch = 0 : i64, scratch_operands = 0 : i64, tpu.core_type = #tpu.core_type<tc>, window_params = [{transform_indices = @transform_0, window_bounds = array<i64: 1, 1, 7, 21>}, {pipeline_mode = #tpu.pipeline_mode<synchronous>, transform_indices = @transform_1, window_bounds = array<i64: 2, 21, 96>}, {pipeline_mode = #tpu.pipeline_mode<synchronous>, transform_indices = @transform_2, window_bounds = array<i64: 1, 96>}, {pipeline_mode = #tpu.pipeline_mode<synchronous>, transform_indices = @transform_3, window_bounds = array<i64: 2, 80, 64>}, {pipeline_mode = #tpu.pipeline_mode<synchronous>, transform_indices = @transform_4, window_bounds = array<i64: 1, 64>}, {pipeline_mode = #tpu.pipeline_mode<synchronous>, transform_indices = @transform_5, window_bounds = array<i64: 2, 64, 64>}, {pipeline_mode = #tpu.pipeline_mode<synchronous>, transform_indices = @transform_6, window_bounds = array<i64: 1, 64>}, {pipeline_mode = #tpu.pipeline_mode<synchronous>, transform_indices = @transform_7, window_bounds = array<i64: 64, 128>}, {pipeline_mode = #tpu.pipeline_mode<synchronous>, transform_indices = @transform_8, window_bounds = array<i64: 1, 128>}, {pipeline_mode = #tpu.pipeline_mode<synchronous>, transform_indices = @transform_9, window_bounds = array<i64: 128, 8>}, {pipeline_mode = #tpu.pipeline_mode<synchronous>, transform_indices = @transform_10, window_bounds = array<i64: 1, 8>}, {transform_indices = @transform_11, window_bounds = array<i64: 1, 1, 8>}]} {
    %c0 = arith.constant 0 : index
    %c0_0 = arith.constant 0 : index
    %c0_1 = arith.constant 0 : index
    %c0_2 = arith.constant 0 : index
    %0 = vector.load %arg1[%c0, %c0_0, %c0_1, %c0_2] : memref<1x1x7x21xf32, #tpu.memory_space<vmem>>, vector<1x1x7x21xf32>
    %1 = vector.shape_cast %0 : vector<1x1x7x21xf32> to vector<1x7x21xf32>
    %2 = vector.extract_strided_slice %1 {offsets = [0, 0, 0], sizes = [1, 6, 21], strides = [1, 1, 1]} : vector<1x7x21xf32> to vector<1x6x21xf32>
    %3 = vector.shape_cast %2 : vector<1x6x21xf32> to vector<6x21xf32>
    %4 = vector.extract_strided_slice %1 {offsets = [0, 1, 0], sizes = [1, 6, 21], strides = [1, 1, 1]} : vector<1x7x21xf32> to vector<1x6x21xf32>
    %5 = vector.shape_cast %4 : vector<1x6x21xf32> to vector<6x21xf32>
    %c0_3 = arith.constant 0 : index
    %c0_4 = arith.constant 0 : index
    %c0_5 = arith.constant 0 : index
    %6 = vector.load %arg2[%c0_3, %c0_4, %c0_5] : memref<2x21x96xf32, #tpu.memory_space<vmem>>, vector<1x21x96xf32>
    %7 = vector.shape_cast %6 : vector<1x21x96xf32> to vector<21x96xf32>
    %cst = arith.constant dense<0.000000e+00> : vector<6x96xf32>
    %8 = tpu.matmul %3, %7, %cst {dimension_numbers = #tpu.dot_dimension_numbers<[1], [0], [0], [1], [0, 0, 1, 1], [], []>} : vector<6x21xf32>, vector<21x96xf32>, vector<6x96xf32> -> vector<6x96xf32>
    %c1 = arith.constant 1 : index
    %c0_6 = arith.constant 0 : index
    %c0_7 = arith.constant 0 : index
    %9 = vector.load %arg2[%c1, %c0_6, %c0_7] : memref<2x21x96xf32, #tpu.memory_space<vmem>>, vector<1x21x96xf32>
    %10 = vector.shape_cast %9 : vector<1x21x96xf32> to vector<21x96xf32>
    %cst_8 = arith.constant dense<0.000000e+00> : vector<6x96xf32>
    %11 = tpu.matmul %5, %10, %cst_8 {dimension_numbers = #tpu.dot_dimension_numbers<[1], [0], [0], [1], [0, 0, 1, 1], [], []>} : vector<6x21xf32>, vector<21x96xf32>, vector<6x96xf32> -> vector<6x96xf32>
    %12 = arith.addf %8, %11 : vector<6x96xf32>
    %c0_9 = arith.constant 0 : index
    %c0_10 = arith.constant 0 : index
    %13 = vector.load %arg3[%c0_9, %c0_10] : memref<1x96xf32, #tpu.memory_space<vmem>>, vector<1x96xf32>
    %14 = vector.broadcast %13 : vector<1x96xf32> to vector<6x96xf32>
    %15 = arith.addf %12, %14 : vector<6x96xf32>
    %cst_11 = arith.constant 0.000000e+00 : f32
    %16 = vector.broadcast %cst_11 : f32 to vector<6x96xf32>
    %17 = arith.maximumf %15, %16 : vector<6x96xf32>
    %18 = vector.shape_cast %17 : vector<6x96xf32> to vector<1x6x96xf32>
    %19 = vector.extract_strided_slice %18 {offsets = [0, 0, 0], sizes = [1, 1, 96], strides = [1, 1, 1]} : vector<1x6x96xf32> to vector<1x1x96xf32>
    %20 = vector.extract_strided_slice %18 {offsets = [0, 1, 0], sizes = [1, 1, 96], strides = [1, 1, 1]} : vector<1x6x96xf32> to vector<1x1x96xf32>
    %21 = arith.maximumf %19, %20 : vector<1x1x96xf32>
    %22 = vector.extract_strided_slice %18 {offsets = [0, 2, 0], sizes = [1, 1, 96], strides = [1, 1, 1]} : vector<1x6x96xf32> to vector<1x1x96xf32>
    %23 = vector.extract_strided_slice %18 {offsets = [0, 3, 0], sizes = [1, 1, 96], strides = [1, 1, 1]} : vector<1x6x96xf32> to vector<1x1x96xf32>
    %24 = arith.maximumf %22, %23 : vector<1x1x96xf32>
    %25 = vector.extract_strided_slice %18 {offsets = [0, 4, 0], sizes = [1, 1, 96], strides = [1, 1, 1]} : vector<1x6x96xf32> to vector<1x1x96xf32>
    %26 = vector.extract_strided_slice %18 {offsets = [0, 5, 0], sizes = [1, 1, 96], strides = [1, 1, 1]} : vector<1x6x96xf32> to vector<1x1x96xf32>
    %27 = arith.maximumf %25, %26 : vector<1x1x96xf32>
    %28 = tpu.concatenate %21, %24, %27 in 1 : vector<1x1x96xf32>, vector<1x1x96xf32>, vector<1x1x96xf32> -> vector<1x3x96xf32>
    %29 = vector.extract_strided_slice %28 {offsets = [0, 0, 0], sizes = [1, 3, 80], strides = [1, 1, 1]} : vector<1x3x96xf32> to vector<1x3x80xf32>
    %30 = vector.extract_strided_slice %28 {offsets = [0, 0, 16], sizes = [1, 3, 80], strides = [1, 1, 1]} : vector<1x3x96xf32> to vector<1x3x80xf32>
    %31 = arith.maximumf %29, %30 : vector<1x3x80xf32>
    %32 = vector.extract_strided_slice %31 {offsets = [0, 0, 0], sizes = [1, 2, 80], strides = [1, 1, 1]} : vector<1x3x80xf32> to vector<1x2x80xf32>
    %33 = vector.shape_cast %32 : vector<1x2x80xf32> to vector<2x80xf32>
    %34 = vector.extract_strided_slice %31 {offsets = [0, 1, 0], sizes = [1, 2, 80], strides = [1, 1, 1]} : vector<1x3x80xf32> to vector<1x2x80xf32>
    %35 = vector.shape_cast %34 : vector<1x2x80xf32> to vector<2x80xf32>
    %c0_12 = arith.constant 0 : index
    %c0_13 = arith.constant 0 : index
    %c0_14 = arith.constant 0 : index
    %36 = vector.load %arg4[%c0_12, %c0_13, %c0_14] : memref<2x80x64xf32, #tpu.memory_space<vmem>>, vector<1x80x64xf32>
    %37 = vector.shape_cast %36 : vector<1x80x64xf32> to vector<80x64xf32>
    %cst_15 = arith.constant dense<0.000000e+00> : vector<2x64xf32>
    %38 = tpu.matmul %33, %37, %cst_15 {dimension_numbers = #tpu.dot_dimension_numbers<[1], [0], [0], [1], [0, 0, 1, 1], [], []>} : vector<2x80xf32>, vector<80x64xf32>, vector<2x64xf32> -> vector<2x64xf32>
    %c1_16 = arith.constant 1 : index
    %c0_17 = arith.constant 0 : index
    %c0_18 = arith.constant 0 : index
    %39 = vector.load %arg4[%c1_16, %c0_17, %c0_18] : memref<2x80x64xf32, #tpu.memory_space<vmem>>, vector<1x80x64xf32>
    %40 = vector.shape_cast %39 : vector<1x80x64xf32> to vector<80x64xf32>
    %cst_19 = arith.constant dense<0.000000e+00> : vector<2x64xf32>
    %41 = tpu.matmul %35, %40, %cst_19 {dimension_numbers = #tpu.dot_dimension_numbers<[1], [0], [0], [1], [0, 0, 1, 1], [], []>} : vector<2x80xf32>, vector<80x64xf32>, vector<2x64xf32> -> vector<2x64xf32>
    %42 = arith.addf %38, %41 : vector<2x64xf32>
    %c0_20 = arith.constant 0 : index
    %c0_21 = arith.constant 0 : index
    %43 = vector.load %arg5[%c0_20, %c0_21] : memref<1x64xf32, #tpu.memory_space<vmem>>, vector<1x64xf32>
    %44 = vector.broadcast %43 : vector<1x64xf32> to vector<2x64xf32>
    %45 = arith.addf %42, %44 : vector<2x64xf32>
    %cst_22 = arith.constant 0.000000e+00 : f32
    %46 = vector.broadcast %cst_22 : f32 to vector<2x64xf32>
    %47 = arith.maximumf %45, %46 : vector<2x64xf32>
    %48 = vector.shape_cast %47 : vector<2x64xf32> to vector<1x2x64xf32>
    %49 = vector.extract_strided_slice %48 {offsets = [0, 0, 0], sizes = [1, 1, 64], strides = [1, 1, 1]} : vector<1x2x64xf32> to vector<1x1x64xf32>
    %50 = vector.shape_cast %49 : vector<1x1x64xf32> to vector<1x64xf32>
    %51 = vector.extract_strided_slice %48 {offsets = [0, 1, 0], sizes = [1, 1, 64], strides = [1, 1, 1]} : vector<1x2x64xf32> to vector<1x1x64xf32>
    %52 = vector.shape_cast %51 : vector<1x1x64xf32> to vector<1x64xf32>
    %c0_23 = arith.constant 0 : index
    %c0_24 = arith.constant 0 : index
    %c0_25 = arith.constant 0 : index
    %53 = vector.load %arg6[%c0_23, %c0_24, %c0_25] : memref<2x64x64xf32, #tpu.memory_space<vmem>>, vector<1x64x64xf32>
    %54 = vector.shape_cast %53 : vector<1x64x64xf32> to vector<64x64xf32>
    %cst_26 = arith.constant dense<0.000000e+00> : vector<1x64xf32>
    %55 = tpu.matmul %50, %54, %cst_26 {dimension_numbers = #tpu.dot_dimension_numbers<[1], [0], [0], [1], [0, 0, 1, 1], [], []>} : vector<1x64xf32>, vector<64x64xf32>, vector<1x64xf32> -> vector<1x64xf32>
    %c1_27 = arith.constant 1 : index
    %c0_28 = arith.constant 0 : index
    %c0_29 = arith.constant 0 : index
    %56 = vector.load %arg6[%c1_27, %c0_28, %c0_29] : memref<2x64x64xf32, #tpu.memory_space<vmem>>, vector<1x64x64xf32>
    %57 = vector.shape_cast %56 : vector<1x64x64xf32> to vector<64x64xf32>
    %cst_30 = arith.constant dense<0.000000e+00> : vector<1x64xf32>
    %58 = tpu.matmul %52, %57, %cst_30 {dimension_numbers = #tpu.dot_dimension_numbers<[1], [0], [0], [1], [0, 0, 1, 1], [], []>} : vector<1x64xf32>, vector<64x64xf32>, vector<1x64xf32> -> vector<1x64xf32>
    %59 = arith.addf %55, %58 : vector<1x64xf32>
    %c0_31 = arith.constant 0 : index
    %c0_32 = arith.constant 0 : index
    %60 = vector.load %arg7[%c0_31, %c0_32] : memref<1x64xf32, #tpu.memory_space<vmem>>, vector<1x64xf32>
    %61 = arith.addf %59, %60 : vector<1x64xf32>
    %cst_33 = arith.constant 0.000000e+00 : f32
    %62 = vector.broadcast %cst_33 : f32 to vector<1x64xf32>
    %63 = arith.maximumf %61, %62 : vector<1x64xf32>
    %64 = vector.shape_cast %63 : vector<1x64xf32> to vector<1x1x64xf32>
    %65 = vector.shape_cast %64 : vector<1x1x64xf32> to vector<1x64xf32>
    %c0_34 = arith.constant 0 : index
    %c0_35 = arith.constant 0 : index
    %66 = vector.load %arg8[%c0_34, %c0_35] : memref<64x128xf32, #tpu.memory_space<vmem>>, vector<64x128xf32>
    %cst_36 = arith.constant dense<0.000000e+00> : vector<1x128xf32>
    %67 = tpu.matmul %65, %66, %cst_36 {dimension_numbers = #tpu.dot_dimension_numbers<[1], [0], [0], [1], [0, 0, 1, 1], [], []>} : vector<1x64xf32>, vector<64x128xf32>, vector<1x128xf32> -> vector<1x128xf32>
    %c0_37 = arith.constant 0 : index
    %c0_38 = arith.constant 0 : index
    %68 = vector.load %arg9[%c0_37, %c0_38] : memref<1x128xf32, #tpu.memory_space<vmem>>, vector<1x128xf32>
    %69 = arith.addf %67, %68 : vector<1x128xf32>
    %70 = math.tanh %69 : vector<1x128xf32>
    %c0_39 = arith.constant 0 : index
    %c0_40 = arith.constant 0 : index
    %71 = vector.load %arg10[%c0_39, %c0_40] : memref<128x8xf32, #tpu.memory_space<vmem>>, vector<128x8xf32>
    %cst_41 = arith.constant dense<0.000000e+00> : vector<1x8xf32>
    %72 = tpu.matmul %70, %71, %cst_41 {dimension_numbers = #tpu.dot_dimension_numbers<[1], [0], [0], [1], [0, 0, 1, 1], [], []>} : vector<1x128xf32>, vector<128x8xf32>, vector<1x8xf32> -> vector<1x8xf32>
    %c0_42 = arith.constant 0 : index
    %c0_43 = arith.constant 0 : index
    %73 = vector.load %arg11[%c0_42, %c0_43] : memref<1x8xf32, #tpu.memory_space<vmem>>, vector<1x8xf32>
    %74 = arith.addf %72, %73 : vector<1x8xf32>
    %75 = vector.extract_strided_slice %74 {offsets = [0, 0], sizes = [1, 7], strides = [1, 1]} : vector<1x8xf32> to vector<1x7xf32>
    %cst_44 = arith.constant dense<0xFF800000> : vector<1xf32>
    %76 = vector.multi_reduction <maximumf>, %75, %cst_44 [1] : vector<1x7xf32> to vector<1xf32>
    %77 = vector.shape_cast %76 : vector<1xf32> to vector<1x1xf32>
    %78 = vector.broadcast %77 : vector<1x1xf32> to vector<1x7xf32>
    %79 = arith.subf %75, %78 : vector<1x7xf32>
    %80 = math.exp %79 : vector<1x7xf32>
    %cst_45 = arith.constant dense<0.000000e+00> : vector<1xf32>
    %81 = vector.multi_reduction <add>, %80, %cst_45 [1] : vector<1x7xf32> to vector<1xf32>
    %82 = vector.shape_cast %81 : vector<1xf32> to vector<1x1xf32>
    %83 = math.log %82 : vector<1x1xf32>
    %84 = arith.addf %77, %83 : vector<1x1xf32>
    %85 = vector.broadcast %84 : vector<1x1xf32> to vector<1x7xf32>
    %86 = arith.subf %75, %85 : vector<1x7xf32>
    %87 = vector.extract_strided_slice %74 {offsets = [0, 7], sizes = [1, 1], strides = [1, 1]} : vector<1x8xf32> to vector<1x1xf32>
    %88 = tpu.concatenate %86, %87 in 1 : vector<1x7xf32>, vector<1x1xf32> -> vector<1x8xf32>
    %c0_46 = arith.constant 0 : index
    %c0_47 = arith.constant 0 : index
    %c0_48 = arith.constant 0 : index
    %89 = vector.load %arg12[%c0_46, %c0_47, %c0_48] : memref<1x1x8xf32, #tpu.memory_space<vmem>>, vector<1x1x8xf32>
    %90 = vector.shape_cast %89 : vector<1x1x8xf32> to vector<1x8xf32>
    %91 = vector.shape_cast %88 : vector<1x8xf32> to vector<1x1x8xf32>
    tpu.vector_store %arg12[%c0_46, %c0_47, %c0_48], %91 {strides = array<i32>} : memref<1x1x8xf32, #tpu.memory_space<vmem>>, vector<1x1x8xf32>,
    return
  }
  func.func @transform_0(%arg0: i32) -> (i32, i32, i32, i32) {
    %c0_i32 = arith.constant 0 : i32
    %c0_i32_0 = arith.constant 0 : i32
    %c0_i32_1 = arith.constant 0 : i32
    %c0_i32_2 = arith.constant 0 : i32
    return %arg0, %c0_i32, %c0_i32_0, %c0_i32_1 : i32, i32, i32, i32
  }
  func.func @transform_1(%arg0: i32) -> (i32, i32, i32) {
    %c0_i32 = arith.constant 0 : i32
    %c0_i32_0 = arith.constant 0 : i32
    %c0_i32_1 = arith.constant 0 : i32
    %c0_i32_2 = arith.constant 0 : i32
    return %c0_i32, %c0_i32_0, %c0_i32_1 : i32, i32, i32
  }
  func.func @transform_2(%arg0: i32) -> (i32, i32) {
    %c0_i32 = arith.constant 0 : i32
    %c0_i32_0 = arith.constant 0 : i32
    %c0_i32_1 = arith.constant 0 : i32
    return %c0_i32, %c0_i32_0 : i32, i32
  }
  func.func @transform_3(%arg0: i32) -> (i32, i32, i32) {
    %c0_i32 = arith.constant 0 : i32
    %c0_i32_0 = arith.constant 0 : i32
    %c0_i32_1 = arith.constant 0 : i32
    %c0_i32_2 = arith.constant 0 : i32
    return %c0_i32, %c0_i32_0, %c0_i32_1 : i32, i32, i32
  }
  func.func @transform_4(%arg0: i32) -> (i32, i32) {
    %c0_i32 = arith.constant 0 : i32
    %c0_i32_0 = arith.constant 0 : i32
    %c0_i32_1 = arith.constant 0 : i32
    return %c0_i32, %c0_i32_0 : i32, i32
  }
  func.func @transform_5(%arg0: i32) -> (i32, i32, i32) {
    %c0_i32 = arith.constant 0 : i32
    %c0_i32_0 = arith.constant 0 : i32
    %c0_i32_1 = arith.constant 0 : i32
    %c0_i32_2 = arith.constant 0 : i32
    return %c0_i32, %c0_i32_0, %c0_i32_1 : i32, i32, i32
  }
  func.func @transform_6(%arg0: i32) -> (i32, i32) {
    %c0_i32 = arith.constant 0 : i32
    %c0_i32_0 = arith.constant 0 : i32
    %c0_i32_1 = arith.constant 0 : i32
    return %c0_i32, %c0_i32_0 : i32, i32
  }
  func.func @transform_7(%arg0: i32) -> (i32, i32) {
    %c0_i32 = arith.constant 0 : i32
    %c0_i32_0 = arith.constant 0 : i32
    %c0_i32_1 = arith.constant 0 : i32
    return %c0_i32, %c0_i32_0 : i32, i32
  }
  func.func @transform_8(%arg0: i32) -> (i32, i32) {
    %c0_i32 = arith.constant 0 : i32
    %c0_i32_0 = arith.constant 0 : i32
    %c0_i32_1 = arith.constant 0 : i32
    return %c0_i32, %c0_i32_0 : i32, i32
  }
  func.func @transform_9(%arg0: i32) -> (i32, i32) {
    %c0_i32 = arith.constant 0 : i32
    %c0_i32_0 = arith.constant 0 : i32
    %c0_i32_1 = arith.constant 0 : i32
    return %c0_i32, %c0_i32_0 : i32, i32
  }
  func.func @transform_10(%arg0: i32) -> (i32, i32) {
    %c0_i32 = arith.constant 0 : i32
    %c0_i32_0 = arith.constant 0 : i32
    %c0_i32_1 = arith.constant 0 : i32
    return %c0_i32, %c0_i32_0 : i32, i32
  }
  func.func @transform_11(%arg0: i32) -> (i32, i32, i32) {
    %c0_i32 = arith.constant 0 : i32
    %c0_i32_0 = arith.constant 0 : i32
    %c0_i32_1 = arith.constant 0 : i32
    return %arg0, %c0_i32, %c0_i32_0 : i32, i32, i32
  }
}

</mosaic_0001>

<llo_original>
// kernel: communication_net_forward.1
$region0: #{communication_net_forward.1}
  #allocation0 [shape = 'u32[]', space=smem, size = 0x4, offset = 0x4, fixed_abs, tag = 'smem constant byte address 0x4 - core index']
  #allocation1 [shape = 'u32[144,128]{1,0:T(1,128)}', space=vmem, size = 0x12000, scoped, tag = 'internal scratch']
  %s0 = inlined_call_operand.vmem [shape: f32[2,1,7,21], index: 0, kind: input, shape index: {}]
  %s1 = inlined_call_operand.vmem [shape: f32[2,21,96], index: 1, kind: input, shape index: {}]
  %s2 = inlined_call_operand.vmem [shape: f32[1,96], index: 2, kind: input, shape index: {}]
  %s3 = inlined_call_operand.vmem [shape: f32[2,80,64], index: 3, kind: input, shape index: {}]
  %s4 = inlined_call_operand.vmem [shape: f32[1,64], index: 4, kind: input, shape index: {}]
  %s5 = inlined_call_operand.vmem [shape: f32[2,64,64], index: 5, kind: input, shape index: {}]
  %s6 = inlined_call_operand.vmem [shape: f32[1,64], index: 6, kind: input, shape index: {}]
  %s7 = inlined_call_operand.vmem [shape: f32[64,128], index: 7, kind: input, shape index: {}]
  %s8 = inlined_call_operand.vmem [shape: f32[1,128], index: 8, kind: input, shape index: {}]
  %s9 = inlined_call_operand.vmem [shape: f32[128,8], index: 9, kind: input, shape index: {}]
  %s10 = inlined_call_operand.vmem [shape: f32[1,8], index: 10, kind: input, shape index: {}]
  %s11 = inlined_call_operand.vmem [shape: f32[2,1,8], index: 11, kind: output, shape index: {}]
  %s12 = sld [smem:[#allocation0]]
  $region77: #{communication_net_forward.1} parent=0
    _
  %s14 = ssub.s32 1, %s12
  %s15 = scalar_select 0, %s14, %s12
  loop: start=0, step=1, limit=4
  $region2: #{communication_net_forward.1} parent=0 // loop_pre_header
    _
  $region3: #{communication_net_forward.1} parent=0 // loop_header
    %s17 = sphi 0, %s21
    %p18 = scmp.ge.s32.totalorder %s17, 4
    %s27 = sphi 0, %s29
    %s30 = sphi 0, %s27
    %s31 = sphi 0, %s30
    %s47 = sphi 0, %s31
    %s51 = sphi 0, %s51
    %s53 = sphi 0, %s51
    %s54 = sphi 0, %s53
    %s68 = sphi 0, %s54
    %s72 = sphi 0, %s72
    %s74 = sphi 0, %s72
    %s75 = sphi 0, %s74
    %s89 = sphi 0, %s75
    %s93 = sphi 0, %s93
    %s95 = sphi 0, %s93
    %s96 = sphi 0, %s95
    %s110 = sphi 0, %s96
    %s114 = sphi 0, %s114
    %s116 = sphi 0, %s114
    %s117 = sphi 0, %s116
    %s131 = sphi 0, %s117
    %s135 = sphi 0, %s135
    %s137 = sphi 0, %s135
    %s138 = sphi 0, %s137
    %s152 = sphi 0, %s138
    %s156 = sphi 0, %s156
    %s158 = sphi 0, %s156
    %s159 = sphi 0, %s158
    %s173 = sphi 0, %s159
    %s177 = sphi 0, %s177
    %s179 = sphi 0, %s177
    %s180 = sphi 0, %s179
    %s194 = sphi 0, %s180
    %s198 = sphi 0, %s198
    %s200 = sphi 0, %s198
    %s201 = sphi 0, %s200
    %s215 = sphi 0, %s201
    %s219 = sphi 0, %s219
    %s221 = sphi 0, %s219
    %s222 = sphi 0, %s221
    %s236 = sphi 0, %s222
    %s240 = sphi 0, %s240
    %s242 = sphi 0, %s240
    %s243 = sphi 0, %s242
    %s257 = sphi 0, %s243
    %s263 = sphi 0, %s265
    %s266 = sphi 0, %s263
    %s267 = sphi 0, %s266
    %s283 = sphi 0, %s267
  $region4: #{communication_net_forward.1} parent=0 // loop_header_branch
    %20 = sbr.rel (%p18) target = $region8
  $region5: #{communication_net_forward.1} parent=0 // loop_body
    %s22 = ssub.s32 %s17, 1
    %s23 = ssub.s32 %s17, 2
    %s24 = sadd.s32 %s17, 1
    %s25 = ssub.s32 %s17, %s24
    %p26 = scmp.eq.s32.totalorder %s25, 0
    %s28 = sadd.s32 %s27, 1
    %s29 = scalar_select %p26, %s27, %s28
    %p32 = pneg %p26
    %p33 = scmp.eq.s32.totalorder %s17, 1
    %p34 = por %p32, %p33
    %p35 = scmp.ne.s32.totalorder %s27, %s30
    %p36 = scmp.eq.s32.totalorder %s17, 0
    %p37 = por %p35, %p36
    %p38 = scmp.ne.s32.totalorder %s27, %s30
    %p39 = scmp.eq.s32.totalorder %s22, 1
    %p40 = por %p38, %p39
    %p41 = scmp.ne.s32.totalorder %s30, %s31
    %p42 = scmp.eq.s32.totalorder %s22, 0
    %p43 = por %p41, %p42
    %p44 = scmp.ne.s32.totalorder %s30, %s31
    %p45 = scmp.eq.s32.totalorder %s23, 1
    %p46 = por %p44, %p45
    %p48 = scmp.ne.s32.totalorder %s31, %s47
    %p49 = scmp.eq.s32.totalorder %s23, 0
    %p50 = por %p48, %p49
    %s52 = sadd.s32 %s51, 1
    %p55 = scmp.eq.s32.totalorder %s17, 1
    %p56 = scmp.ne.s32.totalorder %s51, %s53
    %p57 = scmp.eq.s32.totalorder %s17, 0
    %p58 = por %p56, %p57
    %p59 = scmp.ne.s32.totalorder %s51, %s53
    %p60 = scmp.eq.s32.totalorder %s22, 1
    %p61 = por %p59, %p60
    %p62 = scmp.ne.s32.totalorder %s53, %s54
    %p63 = scmp.eq.s32.totalorder %s22, 0
    %p64 = por %p62, %p63
    %p65 = scmp.ne.s32.totalorder %s53, %s54
    %p66 = scmp.eq.s32.totalorder %s23, 1
    %p67 = por %p65, %p66
    %p69 = scmp.ne.s32.totalorder %s54, %s68
    %p70 = scmp.eq.s32.totalorder %s23, 0
    %p71 = por %p69, %p70
    %s73 = sadd.s32 %s72, 1
    %p76 = scmp.eq.s32.totalorder %s17, 1
    %p77 = scmp.ne.s32.totalorder %s72, %s74
    %p78 = scmp.eq.s32.totalorder %s17, 0
    %p79 = por %p77, %p78
    %p80 = scmp.ne.s32.totalorder %s72, %s74
    %p81 = scmp.eq.s32.totalorder %s22, 1
    %p82 = por %p80, %p81
    %p83 = scmp.ne.s32.totalorder %s74, %s75
    %p84 = scmp.eq.s32.totalorder %s22, 0
    %p85 = por %p83, %p84
    %p86 = scmp.ne.s32.totalorder %s74, %s75
    %p87 = scmp.eq.s32.totalorder %s23, 1
    %p88 = por %p86, %p87
    %p90 = scmp.ne.s32.totalorder %s75, %s89
    %p91 = scmp.eq.s32.totalorder %s23, 0
    %p92 = por %p90, %p91
    %s94 = sadd.s32 %s93, 1
    %p97 = scmp.eq.s32.totalorder %s17, 1
    %p98 = scmp.ne.s32.totalorder %s93, %s95
    %p99 = scmp.eq.s32.totalorder %s17, 0
    %p100 = por %p98, %p99
    %p101 = scmp.ne.s32.totalorder %s93, %s95
    %p102 = scmp.eq.s32.totalorder %s22, 1
    %p103 = por %p101, %p102
    %p104 = scmp.ne.s32.totalorder %s95, %s96
    %p105 = scmp.eq.s32.totalorder %s22, 0
    %p106 = por %p104, %p105
    %p107 = scmp.ne.s32.totalorder %s95, %s96
    %p108 = scmp.eq.s32.totalorder %s23, 1
    %p109 = por %p107, %p108
    %p111 = scmp.ne.s32.totalorder %s96, %s110
    %p112 = scmp.eq.s32.totalorder %s23, 0
    %p113 = por %p111, %p112
    %s115 = sadd.s32 %s114, 1
    %p118 = scmp.eq.s32.totalorder %s17, 1
    %p119 = scmp.ne.s32.totalorder %s114, %s116
    %p120 = scmp.eq.s32.totalorder %s17, 0
    %p121 = por %p119, %p120
    %p122 = scmp.ne.s32.totalorder %s114, %s116
    %p123 = scmp.eq.s32.totalorder %s22, 1
    %p124 = por %p122, %p123
    %p125 = scmp.ne.s32.totalorder %s116, %s117
    %p126 = scmp.eq.s32.totalorder %s22, 0
    %p127 = por %p125, %p126
    %p128 = scmp.ne.s32.totalorder %s116, %s117
    %p129 = scmp.eq.s32.totalorder %s23, 1
    %p130 = por %p128, %p129
    %p132 = scmp.ne.s32.totalorder %s117, %s131
    %p133 = scmp.eq.s32.totalorder %s23, 0
    %p134 = por %p132, %p133
    %s136 = sadd.s32 %s135, 1
    %p139 = scmp.eq.s32.totalorder %s17, 1
    %p140 = scmp.ne.s32.totalorder %s135, %s137
    %p141 = scmp.eq.s32.totalorder %s17, 0
    %p142 = por %p140, %p141
    %p143 = scmp.ne.s32.totalorder %s135, %s137
    %p144 = scmp.eq.s32.totalorder %s22, 1
    %p145 = por %p143, %p144
    %p146 = scmp.ne.s32.totalorder %s137, %s138
    %p147 = scmp.eq.s32.totalorder %s22, 0
    %p148 = por %p146, %p147
    %p149 = scmp.ne.s32.totalorder %s137, %s138
    %p150 = scmp.eq.s32.totalorder %s23, 1
    %p151 = por %p149, %p150
    %p153 = scmp.ne.s32.totalorder %s138, %s152
    %p154 = scmp.eq.s32.totalorder %s23, 0
    %p155 = por %p153, %p154
    %s157 = sadd.s32 %s156, 1
    %p160 = scmp.eq.s32.totalorder %s17, 1
    %p161 = scmp.ne.s32.totalorder %s156, %s158
    %p162 = scmp.eq.s32.totalorder %s17, 0
    %p163 = por %p161, %p162
    %p164 = scmp.ne.s32.totalorder %s156, %s158
    %p165 = scmp.eq.s32.totalorder %s22, 1
    %p166 = por %p164, %p165
    %p167 = scmp.ne.s32.totalorder %s158, %s159
    %p168 = scmp.eq.s32.totalorder %s22, 0
    %p169 = por %p167, %p168
    %p170 = scmp.ne.s32.totalorder %s158, %s159
    %p171 = scmp.eq.s32.totalorder %s23, 1
    %p172 = por %p170, %p171
    %p174 = scmp.ne.s32.totalorder %s159, %s173
    %p175 = scmp.eq.s32.totalorder %s23, 0
    %p176 = por %p174, %p175
    %s178 = sadd.s32 %s177, 1
    %p181 = scmp.eq.s32.totalorder %s17, 1
    %p182 = scmp.ne.s32.totalorder %s177, %s179
    %p183 = scmp.eq.s32.totalorder %s17, 0
    %p184 = por %p182, %p183
    %p185 = scmp.ne.s32.totalorder %s177, %s179
    %p186 = scmp.eq.s32.totalorder %s22, 1
    %p187 = por %p185, %p186
    %p188 = scmp.ne.s32.totalorder %s179, %s180
    %p189 = scmp.eq.s32.totalorder %s22, 0
    %p190 = por %p188, %p189
    %p191 = scmp.ne.s32.totalorder %s179, %s180
    %p192 = scmp.eq.s32.totalorder %s23, 1
    %p193 = por %p191, %p192
    %p195 = scmp.ne.s32.totalorder %s180, %s194
    %p196 = scmp.eq.s32.totalorder %s23, 0
    %p197 = por %p195, %p196
    %s199 = sadd.s32 %s198, 1
    %p202 = scmp.eq.s32.totalorder %s17, 1
    %p203 = scmp.ne.s32.totalorder %s198, %s200
    %p204 = scmp.eq.s32.totalorder %s17, 0
    %p205 = por %p203, %p204
    %p206 = scmp.ne.s32.totalorder %s198, %s200
    %p207 = scmp.eq.s32.totalorder %s22, 1
    %p208 = por %p206, %p207
    %p209 = scmp.ne.s32.totalorder %s200, %s201
    %p210 = scmp.eq.s32.totalorder %s22, 0
    %p211 = por %p209, %p210
    %p212 = scmp.ne.s32.totalorder %s200, %s201
    %p213 = scmp.eq.s32.totalorder %s23, 1
    %p214 = por %p212, %p213
    %p216 = scmp.ne.s32.totalorder %s201, %s215
    %p217 = scmp.eq.s32.totalorder %s23, 0
    %p218 = por %p216, %p217
    %s220 = sadd.s32 %s219, 1
    %p223 = scmp.eq.s32.totalorder %s17, 1
    %p224 = scmp.ne.s32.totalorder %s219, %s221
    %p225 = scmp.eq.s32.totalorder %s17, 0
    %p226 = por %p224, %p225
    %p227 = scmp.ne.s32.totalorder %s219, %s221
    %p228 = scmp.eq.s32.totalorder %s22, 1
    %p229 = por %p227, %p228
    %p230 = scmp.ne.s32.totalorder %s221, %s222
    %p231 = scmp.eq.s32.totalorder %s22, 0
    %p232 = por %p230, %p231
    %p233 = scmp.ne.s32.totalorder %s221, %s222
    %p234 = scmp.eq.s32.totalorder %s23, 1
    %p235 = por %p233, %p234
    %p237 = scmp.ne.s32.totalorder %s222, %s236
    %p238 = scmp.eq.s32.totalorder %s23, 0
    %p239 = por %p237, %p238
    %s241 = sadd.s32 %s240, 1
    %p244 = scmp.eq.s32.totalorder %s17, 1
    %p245 = scmp.ne.s32.totalorder %s240, %s242
    %p246 = scmp.eq.s32.totalorder %s17, 0
    %p247 = por %p245, %p246
    %p248 = scmp.ne.s32.totalorder %s240, %s242
    %p249 = scmp.eq.s32.totalorder %s22, 1
    %p250 = por %p248, %p249
    %p251 = scmp.ne.s32.totalorder %s242, %s243
    %p252 = scmp.eq.s32.totalorder %s22, 0
    %p253 = por %p251, %p252
    %p254 = scmp.ne.s32.totalorder %s242, %s243
    %p255 = scmp.eq.s32.totalorder %s23, 1
    %p256 = por %p254, %p255
    %p258 = scmp.ne.s32.totalorder %s243, %s257
    %p259 = scmp.eq.s32.totalorder %s23, 0
    %p260 = por %p258, %p259
    %s261 = ssub.s32 %s17, %s24
    %p262 = scmp.eq.s32.totalorder %s261, 0
    %s264 = sadd.s32 %s263, 1
    %s265 = scalar_select %p262, %s263, %s264
    %p268 = pneg %p262
    %p269 = scmp.eq.s32.totalorder %s17, 1
    %p270 = por %p268, %p269
    %p271 = scmp.ne.s32.totalorder %s263, %s266
    %p272 = scmp.eq.s32.totalorder %s17, 0
    %p273 = por %p271, %p272
    %p274 = scmp.ne.s32.totalorder %s263, %s266
    %p275 = scmp.eq.s32.totalorder %s22, 1
    %p276 = por %p274, %p275
    %p277 = scmp.ne.s32.totalorder %s266, %s267
    %p278 = scmp.eq.s32.totalorder %s22, 0
    %p279 = por %p277, %p278
    %p280 = scmp.ne.s32.totalorder %s266, %s267
    %p281 = scmp.eq.s32.totalorder %s23, 1
    %p282 = por %p280, %p281
    %p284 = scmp.ne.s32.totalorder %s267, %s283
    %p285 = scmp.eq.s32.totalorder %s23, 0
    %p286 = por %p284, %p285
    %p287 = scmp.le.s32.totalorder 1, %s17
    %p288 = scmp.lt.s32.totalorder %s17, 3
    %p289 = pnand %p287, %p288
    %p290 = pneg %p289
    // Predicated region
    $region9: #{communication_net_forward.1} parent=5 // pred_check
      _
    $region10: #{communication_net_forward.1} parent=5 // pred_check_branch
      %292 = sbr.rel (%p289) target = $region12
    $region11: #{communication_net_forward.1} parent=5 // pred_region
      %s293 = ssub.s32 %s17, 1
      // Predicated region
      $region13: #{communication_net_forward.1} parent=11 // pred_check
        %p294 = pneg %p64
      $region14: #{communication_net_forward.1} parent=11 // pred_check_branch
        %296 = sbr.rel (%p294) target = $region16
      $region15: #{communication_net_forward.1} parent=11 // pred_region
        _
      $region16: #{communication_net_forward.1} parent=11 // pred_fallthru
        _
      // Predicated region
      $region17: #{communication_net_forward.1} parent=11 // pred_check
        %p297 = pneg %p85
      $region18: #{communication_net_forward.1} parent=11 // pred_check_branch
        %299 = sbr.rel (%p297) target = $region20
      $region19: #{communication_net_forward.1} parent=11 // pred_region
        _
      $region20: #{communication_net_forward.1} parent=11 // pred_fallthru
        _
      // Predicated region
      $region21: #{communication_net_forward.1} parent=11 // pred_check
        %p300 = pneg %p106
      $region22: #{communication_net_forward.1} parent=11 // pred_check_branch
        %302 = sbr.rel (%p300) target = $region24
      $region23: #{communication_net_forward.1} parent=11 // pred_region
        _
      $region24: #{communication_net_forward.1} parent=11 // pred_fallthru
        _
      // Predicated region
      $region25: #{communication_net_forward.1} parent=11 // pred_check
        %p303 = pneg %p127
      $region26: #{communication_net_forward.1} parent=11 // pred_check_branch
        %305 = sbr.rel (%p303) target = $region28
      $region27: #{communication_net_forward.1} parent=11 // pred_region
        _
      $region28: #{communication_net_forward.1} parent=11 // pred_fallthru
        _
      // Predicated region
      $region29: #{communication_net_forward.1} parent=11 // pred_check
        %p306 = pneg %p148
      $region30: #{communication_net_forward.1} parent=11 // pred_check_branch
        %308 = sbr.rel (%p306) target = $region32
      $region31: #{communication_net_forward.1} parent=11 // pred_region
        _
      $region32: #{communication_net_forward.1} parent=11 // pred_fallthru
        _
      // Predicated region
      $region33: #{communication_net_forward.1} parent=11 // pred_check
        %p309 = pneg %p169
      $region34: #{communication_net_forward.1} parent=11 // pred_check_branch
        %311 = sbr.rel (%p309) target = $region36
      $region35: #{communication_net_forward.1} parent=11 // pred_region
        _
      $region36: #{communication_net_forward.1} parent=11 // pred_fallthru
        _
      // Predicated region
      $region37: #{communication_net_forward.1} parent=11 // pred_check
        %p312 = pneg %p190
      $region38: #{communication_net_forward.1} parent=11 // pred_check_branch
        %314 = sbr.rel (%p312) target = $region40
      $region39: #{communication_net_forward.1} parent=11 // pred_region
        _
      $region40: #{communication_net_forward.1} parent=11 // pred_fallthru
        _
      // Predicated region
      $region41: #{communication_net_forward.1} parent=11 // pred_check
        %p315 = pneg %p211
      $region42: #{communication_net_forward.1} parent=11 // pred_check_branch
        %317 = sbr.rel (%p315) target = $region44
      $region43: #{communication_net_forward.1} parent=11 // pred_region
        _
      $region44: #{communication_net_forward.1} parent=11 // pred_fallthru
        _
      // Predicated region
      $region45: #{communication_net_forward.1} parent=11 // pred_check
        %p318 = pneg %p232
      $region46: #{communication_net_forward.1} parent=11 // pred_check_branch
        %320 = sbr.rel (%p318) target = $region48
      $region47: #{communication_net_forward.1} parent=11 // pred_region
        _
      $region48: #{communication_net_forward.1} parent=11 // pred_fallthru
        _
      // Predicated region
      $region49: #{communication_net_forward.1} parent=11 // pred_check
        %p321 = pneg %p253
      $region50: #{communication_net_forward.1} parent=11 // pred_check_branch
        %323 = sbr.rel (%p321) target = $region52
      $region51: #{communication_net_forward.1} parent=11 // pred_region
        _
      $region52: #{communication_net_forward.1} parent=11 // pred_fallthru
        _
    $region12: #{communication_net_forward.1} parent=5 // pred_fallthru
      _
    %p324 = scmp.lt.s32.totalorder %s17, 2
    // Predicated region
    $region53: #{communication_net_forward.1} parent=5 // pred_check
      %p325 = pneg %p324
    $region54: #{communication_net_forward.1} parent=5 // pred_check_branch
      %327 = sbr.rel (%p325) target = $region56
    $region55: #{communication_net_forward.1} parent=5 // pred_region
      // Predicated region
      $region57: #{communication_net_forward.1} parent=55 // pred_check
        %p328 = pneg %p37
      $region58: #{communication_net_forward.1} parent=55 // pred_check_branch
        %330 = sbr.rel (%p328) target = $region60
      $region59: #{communication_net_forward.1} parent=55 // pred_region
        %p331 = scmp.lt.s32.totalorder %s17, 1
        %s332 = scalar_select %p331, %s17, 1
        %s333 = smul.addr %s332, 8
        %s334 = scalar_lea.vmem %s0, %s333
      $region60: #{communication_net_forward.1} parent=55 // pred_fallthru
        _
    $region56: #{communication_net_forward.1} parent=5 // pred_fallthru
      _
    %p335 = scmp.le.s32.totalorder 1, %s17
    %p336 = scmp.lt.s32.totalorder %s17, 3
    %p337 = pnand %p335, %p336
    %p338 = pneg %p337
    // Predicated region
    $region61: #{communication_net_forward.1} parent=5 // pred_check
      _
    $region62: #{communication_net_forward.1} parent=5 // pred_check_branch
      %340 = sbr.rel (%p337) target = $region64
    $region63: #{communication_net_forward.1} parent=5 // pred_region
      %s341 = ssub.s32 %s17, 1
      %p342 = scmp.lt.s32.totalorder %s22, 1
      %s343 = scalar_select %p342, %s22, 1
      %s344 = smul.addr %s343, 8
      %s345 = scalar_lea.vmem %s0, %s344
      %p346 = pneg %p43
      %p347 = pneg %p40
      %p348 = pneg %p64
      %p349 = pneg %p61
      %p350 = pneg %p85
      %p351 = pneg %p82
      %p352 = pneg %p106
      %p353 = pneg %p103
      %p354 = pneg %p127
      %p355 = pneg %p124
      %p356 = pneg %p148
      %p357 = pneg %p145
      %p358 = pneg %p169
      %p359 = pneg %p166
      %p360 = pneg %p190
      %p361 = pneg %p187
      %p362 = pneg %p211
      %p363 = pneg %p208
      %p364 = pneg %p232
      %p365 = pneg %p229
      %p366 = pneg %p253
      %p367 = pneg %p250
      %p368 = pneg %p279
      %p369 = pneg %p276
      %p370 = scmp.lt.s32.totalorder %s22, 1
      %s371 = scalar_select %p370, %s22, 1
      %s372 = scalar_lea.vmem %s11, %s371
      %p373 = scmp.lt.s32.totalorder %s22, 1
      %s374 = scalar_select %p373, %s22, 1
      %s375 = smul.addr %s374, 8
      %s376 = scalar_lea.vmem %s0, %s375
      %p377 = scmp.lt.s32.totalorder %s22, 1
      %s378 = scalar_select %p377, %s22, 1
      %s379 = scalar_lea.vmem %s11, %s378
      %v380 = vld [vmem:[%s376] sm:$0x7f]
      %v381 = vld [vmem:[%s1] sm:$0xff]
      %v382 = vld [vmem:[%s1 + $0x8] sm:$0xff]
      %v383 = vld [vmem:[%s1 + $0x10] sm:$0x1f]
      %s384 = scalar_lea.vmem %s1, 24
      %v385 = vld [vmem:[%s384] sm:$0xff]
      %v386 = vld [vmem:[%s384 + $0x8] sm:$0xff]
      %v387 = vld [vmem:[%s384 + $0x10] sm:$0x1f]
      %v389 = vrot.slane %v380, 1
      %vm390 = vcmask 171008
      %v391 = vsel %vm390, %v389, 0
      %vm393 = vcmask 1044480
      %v395 = vsel %vm393, %v387, 0
      %397 = vmatprep.subr.mxu0 0.0
      %398 = vmatpush1.msra.mxu0 0.0
      %399 = vmatprep.subr.mxu0 0.0
      %400 = vmatpush1.msra.mxu0 0.0
      %401 = vmatprep.subr.mxu0 0.0
      %402 = vmatpush1.msra.mxu0 0.0
      %403 = vmatprep.subr.mxu0 0.0
      %404 = vmatpush1.msra.mxu0 0.0
      %405 = vmatprep.subr.mxu0 0.0
      %406 = vmatpush1.msra.mxu0 0.0
      %407 = vmatprep.subr.mxu0 0.0
      %408 = vmatpush1.msra.mxu0 0.0
      %409 = vmatprep.subr.mxu0 0.0
      %410 = vmatpush1.msra.mxu0 0.0
      %411 = vmatprep.subr.mxu0 0.0
      %412 = vmatpush1.msra.mxu0 0.0
      %413 = vmatprep.subr.mxu0 0.0
      %414 = vmatpush1.msra.mxu0 0.0
      %415 = vmatprep.subr.mxu0 0.0
      %416 = vmatpush1.msra.mxu0 0.0
      %417 = vmatprep.subr.mxu0 0.0
      %418 = vmatpush1.msra.mxu0 0.0
      %419 = vmatprep.subr.mxu0 0.0
      %420 = vmatpush1.msra.mxu0 0.0
      %421 = vmatprep.subr.mxu0 0.0
      %422 = vmatpush1.msra.mxu0 0.0
      %423 = vmatprep.subr.mxu0 0.0
      %424 = vmatpush1.msra.mxu0 %v395
      %425 = vmatprep.subr.mxu0 0.0
      %426 = vmatpush1.msra.mxu0 %v386
      %427 = vmatprep.subr.mxu0 0.0
      %428 = vmatpush1.msra.mxu0 %v385
      %429 = vmatprep.subr.mxu0 0.0
      %430 = vmatpush2.msra.mxu0 0.0
      %431 = vmatprep.subr.mxu0 0.0
      %432 = vmatpush2.msra.mxu0 0.0
      %433 = vmatprep.subr.mxu0 0.0
      %434 = vmatpush2.msra.mxu0 0.0
      %435 = vmatprep.subr.mxu0 0.0
      %436 = vmatpush2.msra.mxu0 0.0
      %437 = vmatprep.subr.mxu0 0.0
      %438 = vmatpush2.msra.mxu0 0.0
      %439 = vmatprep.subr.mxu0 0.0
      %440 = vmatpush2.msra.mxu0 0.0
      %441 = vmatprep.subr.mxu0 0.0
      %442 = vmatpush2.msra.mxu0 0.0
      %443 = vmatprep.subr.mxu0 0.0
      %444 = vmatpush2.msra.mxu0 0.0
      %445 = vmatprep.subr.mxu0 0.0
      %446 = vmatpush2.msra.mxu0 0.0
      %447 = vmatprep.subr.mxu0 0.0
      %448 = vmatpush2.msra.mxu0 0.0
      %449 = vmatprep.subr.mxu0 0.0
      %450 = vmatpush2.msra.mxu0 0.0
      %451 = vmatprep.subr.mxu0 0.0
      %452 = vmatpush2.msra.mxu0 0.0
      %453 = vmatprep.subr.mxu0 0.0
      %454 = vmatpush2.msra.mxu0 0.0
      %455 = vmatprep.subr.mxu0 0.0
      %456 = vmatpush2.msra.mxu0 0.0
      %457 = vmatprep.subr.mxu0 0.0
      %458 = vmatpush2.msra.mxu0 0.0
      %459 = vmatprep.subr.mxu0 0.0
      %460 = vmatpush2.msra.mxu0 0.0
      %461 = vmatprep.mubr.f32.mxu0 0.0
      %462 = vmatmul.mubr.f32.gmra.mxu0 %v391
      %v463 = vpop.f32.mrf.mxu0
      %v464 = vadd.f32 0.0, %v463
      %v465 = vpop.f32.mrf.mxu0
      %466 = vdwg.mxu0
      %v467 = vsel %vm390, %v380, 0
      %v470 = vsel %vm393, %v383, 0
      %472 = vmatprep.subr.mxu0 0.0
      %473 = vmatpush1.msra.mxu0 0.0
      %474 = vmatprep.subr.mxu0 0.0
      %475 = vmatpush1.msra.mxu0 0.0
      %476 = vmatprep.subr.mxu0 0.0
      %477 = vmatpush1.msra.mxu0 0.0
      %478 = vmatprep.subr.mxu0 0.0
      %479 = vmatpush1.msra.mxu0 0.0
      %480 = vmatprep.subr.mxu0 0.0
      %481 = vmatpush1.msra.mxu0 0.0
      %482 = vmatprep.subr.mxu0 0.0
      %483 = vmatpush1.msra.mxu0 0.0
      %484 = vmatprep.subr.mxu0 0.0
      %485 = vmatpush1.msra.mxu0 0.0
      %486 = vmatprep.subr.mxu0 0.0
      %487 = vmatpush1.msra.mxu0 0.0
      %488 = vmatprep.subr.mxu0 0.0
      %489 = vmatpush1.msra.mxu0 0.0
      %490 = vmatprep.subr.mxu0 0.0
      %491 = vmatpush1.msra.mxu0 0.0
      %492 = vmatprep.subr.mxu0 0.0
      %493 = vmatpush1.msra.mxu0 0.0
      %494 = vmatprep.subr.mxu0 0.0
      %495 = vmatpush1.msra.mxu0 0.0
      %496 = vmatprep.subr.mxu0 0.0
      %497 = vmatpush1.msra.mxu0 0.0
      %498 = vmatprep.subr.mxu0 0.0
      %499 = vmatpush1.msra.mxu0 %v470
      %500 = vmatprep.subr.mxu0 0.0
      %501 = vmatpush1.msra.mxu0 %v382
      %502 = vmatprep.subr.mxu0 0.0
      %503 = vmatpush1.msra.mxu0 %v381
      %504 = vmatprep.subr.mxu0 0.0
      %505 = vmatpush2.msra.mxu0 0.0
      %506 = vmatprep.subr.mxu0 0.0
      %507 = vmatpush2.msra.mxu0 0.0
      %508 = vmatprep.subr.mxu0 0.0
      %509 = vmatpush2.msra.mxu0 0.0
      %510 = vmatprep.subr.mxu0 0.0
      %511 = vmatpush2.msra.mxu0 0.0
      %512 = vmatprep.subr.mxu0 0.0
      %513 = vmatpush2.msra.mxu0 0.0
      %514 = vmatprep.subr.mxu0 0.0
      %515 = vmatpush2.msra.mxu0 0.0
      %516 = vmatprep.subr.mxu0 0.0
      %517 = vmatpush2.msra.mxu0 0.0
      %518 = vmatprep.subr.mxu0 0.0
      %519 = vmatpush2.msra.mxu0 0.0
      %520 = vmatprep.subr.mxu0 0.0
      %521 = vmatpush2.msra.mxu0 0.0
      %522 = vmatprep.subr.mxu0 0.0
      %523 = vmatpush2.msra.mxu0 0.0
      %524 = vmatprep.subr.mxu0 0.0
      %525 = vmatpush2.msra.mxu0 0.0
      %526 = vmatprep.subr.mxu0 0.0
      %527 = vmatpush2.msra.mxu0 0.0
      %528 = vmatprep.subr.mxu0 0.0
      %529 = vmatpush2.msra.mxu0 0.0
      %530 = vmatprep.subr.mxu0 0.0
      %531 = vmatpush2.msra.mxu0 0.0
      %532 = vmatprep.subr.mxu0 0.0
      %533 = vmatpush2.msra.mxu0 0.0
      %534 = vmatprep.subr.mxu0 0.0
      %535 = vmatpush2.msra.mxu0 0.0
      %536 = vmatprep.mubr.f32.mxu0 0.0
      %537 = vmatmul.mubr.f32.gmra.mxu0 %v467
      %v538 = vpop.f32.mrf.mxu0
      %v539 = vadd.f32 %v464, %v538
      %v540 = vpop.f32.mrf.mxu0
      %541 = vdwg.mxu0
      %v542 = vld [vmem:[%s2] sm:$0x1]
      %v544 = vlaneseq
      %v545 = vshrl.u32 %v544, 7
      %v546 = vsub.s32 0, %v545
      %v547 = vrot.slane %v542, %v546
      %v549 = vadd.f32 %v539, %v547
      %v550 = vmax.f32 %v549, 0.0
      %v552 = vrot.slane %v550, 1
      %v554 = vmax.f32 %v550, %v552
      %v556 = vrot.slane %v554, 1
      %v558 = vrot.slane %v554, 2
      %vm560 = vcmask 1040384
      %v561 = vsel %vm560, %v554, %v556
      %vm562 = vcmask 1041408
      %v563 = vsel %vm562, %v561, %v558
      %565 = vrot.lane.b32.xlu0 %v563, 112
      %v566 = vpop.permute.xlu0 %565
      %v568 = vmax.f32 %v563, %v566
      %v569 = vld [vmem:[%s3] sm:$0xff]
      %v570 = vld [vmem:[%s3 + $0x8] sm:$0xff]
      %v571 = vld [vmem:[%s3 + $0x10] sm:$0xff]
      %v572 = vld [vmem:[%s3 + $0x18] sm:$0xff]
      %v573 = vld [vmem:[%s3 + $0x20] sm:$0xff]
      %v574 = vld [vmem:[%s3 + $0x28] sm:$0xff]
      %v575 = vld [vmem:[%s3 + $0x30] sm:$0xff]
      %v576 = vld [vmem:[%s3 + $0x38] sm:$0xff]
      %v577 = vld [vmem:[%s3 + $0x40] sm:$0xff]
      %v578 = vld [vmem:[%s3 + $0x48] sm:$0xff]
      %s579 = scalar_lea.vmem %s3, 80
      %v580 = vld [vmem:[%s579] sm:$0xff]
      %v581 = vld [vmem:[%s579 + $0x8] sm:$0xff]
      %v582 = vld [vmem:[%s579 + $0x10] sm:$0xff]
      %v583 = vld [vmem:[%s579 + $0x18] sm:$0xff]
      %v584 = vld [vmem:[%s579 + $0x20] sm:$0xff]
      %v585 = vld [vmem:[%s579 + $0x28] sm:$0xff]
      %v586 = vld [vmem:[%s579 + $0x30] sm:$0xff]
      %v587 = vld [vmem:[%s579 + $0x38] sm:$0xff]
      %v588 = vld [vmem:[%s579 + $0x40] sm:$0xff]
      %v589 = vld [vmem:[%s579 + $0x48] sm:$0xff]
      %v591 = vrot.slane %v568, 1
      %vm592 = vcmask 654336
      %v593 = vsel %vm592, %v591, 0
      %595 = vmatprep.subr.mxu0 0.0
      %596 = vmatpush1.msra.mxu0 0.0
      %597 = vmatprep.subr.mxu0 0.0
      %598 = vmatpush1.msra.mxu0 0.0
      %599 = vmatprep.subr.mxu0 0.0
      %600 = vmatpush1.msra.mxu0 0.0
      %601 = vmatprep.subr.mxu0 0.0
      %602 = vmatpush1.msra.mxu0 0.0
      %603 = vmatprep.subr.mxu0 0.0
      %604 = vmatpush1.msra.mxu0 0.0
      %605 = vmatprep.subr.mxu0 0.0
      %606 = vmatpush1.msra.mxu0 0.0
      %607 = vmatprep.subr.mxu0 0.0
      %608 = vmatpush1.msra.mxu0 %v589
      %609 = vmatprep.subr.mxu0 0.0
      %610 = vmatpush1.msra.mxu0 %v588
      %611 = vmatprep.subr.mxu0 0.0
      %612 = vmatpush1.msra.mxu0 %v587
      %613 = vmatprep.subr.mxu0 0.0
      %614 = vmatpush1.msra.mxu0 %v586
      %615 = vmatprep.subr.mxu0 0.0
      %616 = vmatpush1.msra.mxu0 %v585
      %617 = vmatprep.subr.mxu0 0.0
      %618 = vmatpush1.msra.mxu0 %v584
      %619 = vmatprep.subr.mxu0 0.0
      %620 = vmatpush1.msra.mxu0 %v583
      %621 = vmatprep.subr.mxu0 0.0
      %622 = vmatpush1.msra.mxu0 %v582
      %623 = vmatprep.subr.mxu0 0.0
      %624 = vmatpush1.msra.mxu0 %v581
      %625 = vmatprep.subr.mxu0 0.0
      %626 = vmatpush1.msra.mxu0 %v580
      %627 = vmatprep.subr.mxu0 0.0
      %628 = vmatpush2.msra.mxu0 0.0
      %629 = vmatprep.subr.mxu0 0.0
      %630 = vmatpush2.msra.mxu0 0.0
      %631 = vmatprep.subr.mxu0 0.0
      %632 = vmatpush2.msra.mxu0 0.0
      %633 = vmatprep.subr.mxu0 0.0
      %634 = vmatpush2.msra.mxu0 0.0
      %635 = vmatprep.subr.mxu0 0.0
      %636 = vmatpush2.msra.mxu0 0.0
      %637 = vmatprep.subr.mxu0 0.0
      %638 = vmatpush2.msra.mxu0 0.0
      %639 = vmatprep.subr.mxu0 0.0
      %640 = vmatpush2.msra.mxu0 0.0
      %641 = vmatprep.subr.mxu0 0.0
      %642 = vmatpush2.msra.mxu0 0.0
      %643 = vmatprep.subr.mxu0 0.0
      %644 = vmatpush2.msra.mxu0 0.0
      %645 = vmatprep.subr.mxu0 0.0
      %646 = vmatpush2.msra.mxu0 0.0
      %647 = vmatprep.subr.mxu0 0.0
      %648 = vmatpush2.msra.mxu0 0.0
      %649 = vmatprep.subr.mxu0 0.0
      %650 = vmatpush2.msra.mxu0 0.0
      %651 = vmatprep.subr.mxu0 0.0
      %652 = vmatpush2.msra.mxu0 0.0
      %653 = vmatprep.subr.mxu0 0.0
      %654 = vmatpush2.msra.mxu0 0.0
      %655 = vmatprep.subr.mxu0 0.0
      %656 = vmatpush2.msra.mxu0 0.0
      %657 = vmatprep.subr.mxu0 0.0
      %658 = vmatpush2.msra.mxu0 0.0
      %659 = vmatprep.mubr.f32.mxu0 0.0
      %660 = vmatmul.mubr.f32.gmra.mxu0 %v593
      %v661 = vpop.f32.mrf.mxu0
      %v662 = vadd.f32 0.0, %v661
      %v663 = vpop.f32.mrf.mxu0
      %664 = vdwg.mxu0
      %v665 = vsel %vm592, %v568, 0
      %667 = vmatprep.subr.mxu0 0.0
      %668 = vmatpush1.msra.mxu0 0.0
      %669 = vmatprep.subr.mxu0 0.0
      %670 = vmatpush1.msra.mxu0 0.0
      %671 = vmatprep.subr.mxu0 0.0
      %672 = vmatpush1.msra.mxu0 0.0
      %673 = vmatprep.subr.mxu0 0.0
      %674 = vmatpush1.msra.mxu0 0.0
      %675 = vmatprep.subr.mxu0 0.0
      %676 = vmatpush1.msra.mxu0 0.0
      %677 = vmatprep.subr.mxu0 0.0
      %678 = vmatpush1.msra.mxu0 0.0
      %679 = vmatprep.subr.mxu0 0.0
      %680 = vmatpush1.msra.mxu0 %v578
      %681 = vmatprep.subr.mxu0 0.0
      %682 = vmatpush1.msra.mxu0 %v577
      %683 = vmatprep.subr.mxu0 0.0
      %684 = vmatpush1.msra.mxu0 %v576
      %685 = vmatprep.subr.mxu0 0.0
      %686 = vmatpush1.msra.mxu0 %v575
      %687 = vmatprep.subr.mxu0 0.0
      %688 = vmatpush1.msra.mxu0 %v574
      %689 = vmatprep.subr.mxu0 0.0
      %690 = vmatpush1.msra.mxu0 %v573
      %691 = vmatprep.subr.mxu0 0.0
      %692 = vmatpush1.msra.mxu0 %v572
      %693 = vmatprep.subr.mxu0 0.0
      %694 = vmatpush1.msra.mxu0 %v571
      %695 = vmatprep.subr.mxu0 0.0
      %696 = vmatpush1.msra.mxu0 %v570
      %697 = vmatprep.subr.mxu0 0.0
      %698 = vmatpush1.msra.mxu0 %v569
      %699 = vmatprep.subr.mxu0 0.0
      %700 = vmatpush2.msra.mxu0 0.0
      %701 = vmatprep.subr.mxu0 0.0
      %702 = vmatpush2.msra.mxu0 0.0
      %703 = vmatprep.subr.mxu0 0.0
      %704 = vmatpush2.msra.mxu0 0.0
      %705 = vmatprep.subr.mxu0 0.0
      %706 = vmatpush2.msra.mxu0 0.0
      %707 = vmatprep.subr.mxu0 0.0
      %708 = vmatpush2.msra.mxu0 0.0
      %709 = vmatprep.subr.mxu0 0.0
      %710 = vmatpush2.msra.mxu0 0.0
      %711 = vmatprep.subr.mxu0 0.0
      %712 = vmatpush2.msra.mxu0 0.0
      %713 = vmatprep.subr.mxu0 0.0
      %714 = vmatpush2.msra.mxu0 0.0
      %715 = vmatprep.subr.mxu0 0.0
      %716 = vmatpush2.msra.mxu0 0.0
      %717 = vmatprep.subr.mxu0 0.0
      %718 = vmatpush2.msra.mxu0 0.0
      %719 = vmatprep.subr.mxu0 0.0
      %720 = vmatpush2.msra.mxu0 0.0
      %721 = vmatprep.subr.mxu0 0.0
      %722 = vmatpush2.msra.mxu0 0.0
      %723 = vmatprep.subr.mxu0 0.0
      %724 = vmatpush2.msra.mxu0 0.0
      %725 = vmatprep.subr.mxu0 0.0
      %726 = vmatpush2.msra.mxu0 0.0
      %727 = vmatprep.subr.mxu0 0.0
      %728 = vmatpush2.msra.mxu0 0.0
      %729 = vmatprep.subr.mxu0 0.0
      %730 = vmatpush2.msra.mxu0 0.0
      %731 = vmatprep.mubr.f32.mxu0 0.0
      %732 = vmatmul.mubr.f32.gmra.mxu0 %v665
      %v733 = vpop.f32.mrf.mxu0
      %v734 = vadd.f32 %v662, %v733
      %v735 = vpop.f32.mrf.mxu0
      %736 = vdwg.mxu0
      %v737 = vld [vmem:[%s4] sm:$0x1]
      %v739 = vlaneseq
      %v740 = vshrl.u32 %v739, 7
      %v741 = vsub.s32 0, %v740
      %v742 = vrot.slane %v737, %v741
      %v744 = vadd.f32 %v734, %v742
      %v745 = vmax.f32 %v744, 0.0
      %v746 = vld [vmem:[%s5] sm:$0xff]
      %v747 = vld [vmem:[%s5 + $0x8] sm:$0xff]
      %v748 = vld [vmem:[%s5 + $0x10] sm:$0xff]
      %v749 = vld [vmem:[%s5 + $0x18] sm:$0xff]
      %v750 = vld [vmem:[%s5 + $0x20] sm:$0xff]
      %v751 = vld [vmem:[%s5 + $0x28] sm:$0xff]
      %v752 = vld [vmem:[%s5 + $0x30] sm:$0xff]
      %v753 = vld [vmem:[%s5 + $0x38] sm:$0xff]
      %s754 = scalar_lea.vmem %s5, 64
      %v755 = vld [vmem:[%s754] sm:$0xff]
      %v756 = vld [vmem:[%s754 + $0x8] sm:$0xff]
      %v757 = vld [vmem:[%s754 + $0x10] sm:$0xff]
      %v758 = vld [vmem:[%s754 + $0x18] sm:$0xff]
      %v759 = vld [vmem:[%s754 + $0x20] sm:$0xff]
      %v760 = vld [vmem:[%s754 + $0x28] sm:$0xff]
      %v761 = vld [vmem:[%s754 + $0x30] sm:$0xff]
      %v762 = vld [vmem:[%s754 + $0x38] sm:$0xff]
      %v764 = vrot.slane %v745, 1
      %vm765 = vcmask 523264
      %v766 = vsel %vm765, %v764, 0
      %768 = vmatprep.subr.mxu0 0.0
      %769 = vmatpush1.msra.mxu0 0.0
      %770 = vmatprep.subr.mxu0 0.0
      %771 = vmatpush1.msra.mxu0 0.0
      %772 = vmatprep.subr.mxu0 0.0
      %773 = vmatpush1.msra.mxu0 0.0
      %774 = vmatprep.subr.mxu0 0.0
      %775 = vmatpush1.msra.mxu0 0.0
      %776 = vmatprep.subr.mxu0 0.0
      %777 = vmatpush1.msra.mxu0 0.0
      %778 = vmatprep.subr.mxu0 0.0
      %779 = vmatpush1.msra.mxu0 0.0
      %780 = vmatprep.subr.mxu0 0.0
      %781 = vmatpush1.msra.mxu0 0.0
      %782 = vmatprep.subr.mxu0 0.0
      %783 = vmatpush1.msra.mxu0 0.0
      %784 = vmatprep.subr.mxu0 0.0
      %785 = vmatpush1.msra.mxu0 %v762
      %786 = vmatprep.subr.mxu0 0.0
      %787 = vmatpush1.msra.mxu0 %v761
      %788 = vmatprep.subr.mxu0 0.0
      %789 = vmatpush1.msra.mxu0 %v760
      %790 = vmatprep.subr.mxu0 0.0
      %791 = vmatpush1.msra.mxu0 %v759
      %792 = vmatprep.subr.mxu0 0.0
      %793 = vmatpush1.msra.mxu0 %v758
      %794 = vmatprep.subr.mxu0 0.0
      %795 = vmatpush1.msra.mxu0 %v757
      %796 = vmatprep.subr.mxu0 0.0
      %797 = vmatpush1.msra.mxu0 %v756
      %798 = vmatprep.subr.mxu0 0.0
      %799 = vmatpush1.msra.mxu0 %v755
      %800 = vmatprep.subr.mxu0 0.0
      %801 = vmatpush2.msra.mxu0 0.0
      %802 = vmatprep.subr.mxu0 0.0
      %803 = vmatpush2.msra.mxu0 0.0
      %804 = vmatprep.subr.mxu0 0.0
      %805 = vmatpush2.msra.mxu0 0.0
      %806 = vmatprep.subr.mxu0 0.0
      %807 = vmatpush2.msra.mxu0 0.0
      %808 = vmatprep.subr.mxu0 0.0
      %809 = vmatpush2.msra.mxu0 0.0
      %810 = vmatprep.subr.mxu0 0.0
      %811 = vmatpush2.msra.mxu0 0.0
      %812 = vmatprep.subr.mxu0 0.0
      %813 = vmatpush2.msra.mxu0 0.0
      %814 = vmatprep.subr.mxu0 0.0
      %815 = vmatpush2.msra.mxu0 0.0
      %816 = vmatprep.subr.mxu0 0.0
      %817 = vmatpush2.msra.mxu0 0.0
      %818 = vmatprep.subr.mxu0 0.0
      %819 = vmatpush2.msra.mxu0 0.0
      %820 = vmatprep.subr.mxu0 0.0
      %821 = vmatpush2.msra.mxu0 0.0
      %822 = vmatprep.subr.mxu0 0.0
      %823 = vmatpush2.msra.mxu0 0.0
      %824 = vmatprep.subr.mxu0 0.0
      %825 = vmatpush2.msra.mxu0 0.0
      %826 = vmatprep.subr.mxu0 0.0
      %827 = vmatpush2.msra.mxu0 0.0
      %828 = vmatprep.subr.mxu0 0.0
      %829 = vmatpush2.msra.mxu0 0.0
      %830 = vmatprep.subr.mxu0 0.0
      %831 = vmatpush2.msra.mxu0 0.0
      %832 = vmatprep.mubr.f32.mxu0 0.0
      %833 = vmatmul.mubr.f32.gmra.mxu0 %v766
      %v834 = vpop.f32.mrf.mxu0
      %v835 = vadd.f32 0.0, %v834
      %v836 = vpop.f32.mrf.mxu0
      %837 = vdwg.mxu0
      %v838 = vsel %vm765, %v745, 0
      %840 = vmatprep.subr.mxu0 0.0
      %841 = vmatpush1.msra.mxu0 0.0
      %842 = vmatprep.subr.mxu0 0.0
      %843 = vmatpush1.msra.mxu0 0.0
      %844 = vmatprep.subr.mxu0 0.0
      %845 = vmatpush1.msra.mxu0 0.0
      %846 = vmatprep.subr.mxu0 0.0
      %847 = vmatpush1.msra.mxu0 0.0
      %848 = vmatprep.subr.mxu0 0.0
      %849 = vmatpush1.msra.mxu0 0.0
      %850 = vmatprep.subr.mxu0 0.0
      %851 = vmatpush1.msra.mxu0 0.0
      %852 = vmatprep.subr.mxu0 0.0
      %853 = vmatpush1.msra.mxu0 0.0
      %854 = vmatprep.subr.mxu0 0.0
      %855 = vmatpush1.msra.mxu0 0.0
      %856 = vmatprep.subr.mxu0 0.0
      %857 = vmatpush1.msra.mxu0 %v753
      %858 = vmatprep.subr.mxu0 0.0
      %859 = vmatpush1.msra.mxu0 %v752
      %860 = vmatprep.subr.mxu0 0.0
      %861 = vmatpush1.msra.mxu0 %v751
      %862 = vmatprep.subr.mxu0 0.0
      %863 = vmatpush1.msra.mxu0 %v750
      %864 = vmatprep.subr.mxu0 0.0
      %865 = vmatpush1.msra.mxu0 %v749
      %866 = vmatprep.subr.mxu0 0.0
      %867 = vmatpush1.msra.mxu0 %v748
      %868 = vmatprep.subr.mxu0 0.0
      %869 = vmatpush1.msra.mxu0 %v747
      %870 = vmatprep.subr.mxu0 0.0
      %871 = vmatpush1.msra.mxu0 %v746
      %872 = vmatprep.subr.mxu0 0.0
      %873 = vmatpush2.msra.mxu0 0.0
      %874 = vmatprep.subr.mxu0 0.0
      %875 = vmatpush2.msra.mxu0 0.0
      %876 = vmatprep.subr.mxu0 0.0
      %877 = vmatpush2.msra.mxu0 0.0
      %878 = vmatprep.subr.mxu0 0.0
      %879 = vmatpush2.msra.mxu0 0.0
      %880 = vmatprep.subr.mxu0 0.0
      %881 = vmatpush2.msra.mxu0 0.0
      %882 = vmatprep.subr.mxu0 0.0
      %883 = vmatpush2.msra.mxu0 0.0
      %884 = vmatprep.subr.mxu0 0.0
      %885 = vmatpush2.msra.mxu0 0.0
      %886 = vmatprep.subr.mxu0 0.0
      %887 = vmatpush2.msra.mxu0 0.0
      %888 = vmatprep.subr.mxu0 0.0
      %889 = vmatpush2.msra.mxu0 0.0
      %890 = vmatprep.subr.mxu0 0.0
      %891 = vmatpush2.msra.mxu0 0.0
      %892 = vmatprep.subr.mxu0 0.0
      %893 = vmatpush2.msra.mxu0 0.0
      %894 = vmatprep.subr.mxu0 0.0
      %895 = vmatpush2.msra.mxu0 0.0
      %896 = vmatprep.subr.mxu0 0.0
      %897 = vmatpush2.msra.mxu0 0.0
      %898 = vmatprep.subr.mxu0 0.0
      %899 = vmatpush2.msra.mxu0 0.0
      %900 = vmatprep.subr.mxu0 0.0
      %901 = vmatpush2.msra.mxu0 0.0
      %902 = vmatprep.subr.mxu0 0.0
      %903 = vmatpush2.msra.mxu0 0.0
      %904 = vmatprep.mubr.f32.mxu0 0.0
      %905 = vmatmul.mubr.f32.gmra.mxu0 %v838
      %v906 = vpop.f32.mrf.mxu0
      %v907 = vadd.f32 %v835, %v906
      %v908 = vpop.f32.mrf.mxu0
      %909 = vdwg.mxu0
      %v910 = vld [vmem:[%s6] sm:$0x1]
      %v911 = vadd.f32 %v907, %v910
      %v912 = vmax.f32 %v911, 0.0
      %v913 = vld [vmem:[%s7] sm:$0xff]
      %v914 = vld [vmem:[%s7 + $0x8] sm:$0xff]
      %v915 = vld [vmem:[%s7 + $0x10] sm:$0xff]
      %v916 = vld [vmem:[%s7 + $0x18] sm:$0xff]
      %v917 = vld [vmem:[%s7 + $0x20] sm:$0xff]
      %v918 = vld [vmem:[%s7 + $0x28] sm:$0xff]
      %v919 = vld [vmem:[%s7 + $0x30] sm:$0xff]
      %v920 = vld [vmem:[%s7 + $0x38] sm:$0xff]
      %v921 = vld [vmem:[%s8] sm:$0x1]
      %v923 = vsel %vm765, %v912, 0
      %925 = vmatprep.subr.mxu0 0.0
      %926 = vmatpush1.msra.mxu0 0.0
      %927 = vmatprep.subr.mxu0 0.0
      %928 = vmatpush1.msra.mxu0 0.0
      %929 = vmatprep.subr.mxu0 0.0
      %930 = vmatpush1.msra.mxu0 0.0
      %931 = vmatprep.subr.mxu0 0.0
      %932 = vmatpush1.msra.mxu0 0.0
      %933 = vmatprep.subr.mxu0 0.0
      %934 = vmatpush1.msra.mxu0 0.0
      %935 = vmatprep.subr.mxu0 0.0
      %936 = vmatpush1.msra.mxu0 0.0
      %937 = vmatprep.subr.mxu0 0.0
      %938 = vmatpush1.msra.mxu0 0.0
      %939 = vmatprep.subr.mxu0 0.0
      %940 = vmatpush1.msra.mxu0 0.0
      %941 = vmatprep.subr.mxu0 0.0
      %942 = vmatpush1.msra.mxu0 %v920
      %943 = vmatprep.subr.mxu0 0.0
      %944 = vmatpush1.msra.mxu0 %v919
      %945 = vmatprep.subr.mxu0 0.0
      %946 = vmatpush1.msra.mxu0 %v918
      %947 = vmatprep.subr.mxu0 0.0
      %948 = vmatpush1.msra.mxu0 %v917
      %949 = vmatprep.subr.mxu0 0.0
      %950 = vmatpush1.msra.mxu0 %v916
      %951 = vmatprep.subr.mxu0 0.0
      %952 = vmatpush1.msra.mxu0 %v915
      %953 = vmatprep.subr.mxu0 0.0
      %954 = vmatpush1.msra.mxu0 %v914
      %955 = vmatprep.subr.mxu0 0.0
      %956 = vmatpush1.msra.mxu0 %v913
      %957 = vmatprep.subr.mxu0 0.0
      %958 = vmatpush2.msra.mxu0 0.0
      %959 = vmatprep.subr.mxu0 0.0
      %960 = vmatpush2.msra.mxu0 0.0
      %961 = vmatprep.subr.mxu0 0.0
      %962 = vmatpush2.msra.mxu0 0.0
      %963 = vmatprep.subr.mxu0 0.0
      %964 = vmatpush2.msra.mxu0 0.0
      %965 = vmatprep.subr.mxu0 0.0
      %966 = vmatpush2.msra.mxu0 0.0
      %967 = vmatprep.subr.mxu0 0.0
      %968 = vmatpush2.msra.mxu0 0.0
      %969 = vmatprep.subr.mxu0 0.0
      %970 = vmatpush2.msra.mxu0 0.0
      %971 = vmatprep.subr.mxu0 0.0
      %972 = vmatpush2.msra.mxu0 0.0
      %973 = vmatprep.subr.mxu0 0.0
      %974 = vmatpush2.msra.mxu0 0.0
      %975 = vmatprep.subr.mxu0 0.0
      %976 = vmatpush2.msra.mxu0 0.0
      %977 = vmatprep.subr.mxu0 0.0
      %978 = vmatpush2.msra.mxu0 0.0
      %979 = vmatprep.subr.mxu0 0.0
      %980 = vmatpush2.msra.mxu0 0.0
      %981 = vmatprep.subr.mxu0 0.0
      %982 = vmatpush2.msra.mxu0 0.0
      %983 = vmatprep.subr.mxu0 0.0
      %984 = vmatpush2.msra.mxu0 0.0
      %985 = vmatprep.subr.mxu0 0.0
      %986 = vmatpush2.msra.mxu0 0.0
      %987 = vmatprep.subr.mxu0 0.0
      %988 = vmatpush2.msra.mxu0 0.0
      %989 = vmatprep.mubr.f32.mxu0 0.0
      %990 = vmatmul.mubr.f32.gmra.mxu0 %v923
      %v991 = vpop.f32.mrf.mxu0
      %v992 = vadd.f32 %v921, %v991
      %v993 = vpop.f32.mrf.mxu0
      %994 = vdwg.mxu0
      %v995 = vtanh.pop %v992
      %v996 = vld [vmem:[%s9] sm:$0xff]
      %v997 = vld [vmem:[%s9 + $0x8] sm:$0xff]
      %v998 = vld [vmem:[%s9 + $0x10] sm:$0xff]
      %v999 = vld [vmem:[%s9 + $0x18] sm:$0xff]
      %v1000 = vld [vmem:[%s9 + $0x20] sm:$0xff]
      %v1001 = vld [vmem:[%s9 + $0x28] sm:$0xff]
      %v1002 = vld [vmem:[%s9 + $0x30] sm:$0xff]
      %v1003 = vld [vmem:[%s9 + $0x38] sm:$0xff]
      %v1004 = vld [vmem:[%s9 + $0x40] sm:$0xff]
      %v1005 = vld [vmem:[%s9 + $0x48] sm:$0xff]
      %v1006 = vld [vmem:[%s9 + $0x50] sm:$0xff]
      %v1007 = vld [vmem:[%s9 + $0x58] sm:$0xff]
      %v1008 = vld [vmem:[%s9 + $0x60] sm:$0xff]
      %v1009 = vld [vmem:[%s9 + $0x68] sm:$0xff]
      %v1010 = vld [vmem:[%s9 + $0x70] sm:$0xff]
      %v1011 = vld [vmem:[%s9 + $0x78] sm:$0xff]
      %v1012 = vld [vmem:[%s10] sm:$0x1]
      %1013 = vmatprep.subr.mxu0 0.0
      %1014 = vmatpush1.msra.mxu0 %v1011
      %1015 = vmatprep.subr.mxu0 0.0
      %1016 = vmatpush1.msra.mxu0 %v1010
      %1017 = vmatprep.subr.mxu0 0.0
      %1018 = vmatpush1.msra.mxu0 %v1009
      %1019 = vmatprep.subr.mxu0 0.0
      %1020 = vmatpush1.msra.mxu0 %v1008
      %1021 = vmatprep.subr.mxu0 0.0
      %1022 = vmatpush1.msra.mxu0 %v1007
      %1023 = vmatprep.subr.mxu0 0.0
      %1024 = vmatpush1.msra.mxu0 %v1006
      %1025 = vmatprep.subr.mxu0 0.0
      %1026 = vmatpush1.msra.mxu0 %v1005
      %1027 = vmatprep.subr.mxu0 0.0
      %1028 = vmatpush1.msra.mxu0 %v1004
      %1029 = vmatprep.subr.mxu0 0.0
      %1030 = vmatpush1.msra.mxu0 %v1003
      %1031 = vmatprep.subr.mxu0 0.0
      %1032 = vmatpush1.msra.mxu0 %v1002
      %1033 = vmatprep.subr.mxu0 0.0
      %1034 = vmatpush1.msra.mxu0 %v1001
      %1035 = vmatprep.subr.mxu0 0.0
      %1036 = vmatpush1.msra.mxu0 %v1000
      %1037 = vmatprep.subr.mxu0 0.0
      %1038 = vmatpush1.msra.mxu0 %v999
      %1039 = vmatprep.subr.mxu0 0.0
      %1040 = vmatpush1.msra.mxu0 %v998
      %1041 = vmatprep.subr.mxu0 0.0
      %1042 = vmatpush1.msra.mxu0 %v997
      %1043 = vmatprep.subr.mxu0 0.0
      %1044 = vmatpush1.msra.mxu0 %v996
      %1045 = vmatprep.subr.mxu0 0.0
      %1046 = vmatpush2.msra.mxu0 0.0
      %1047 = vmatprep.subr.mxu0 0.0
      %1048 = vmatpush2.msra.mxu0 0.0
      %1049 = vmatprep.subr.mxu0 0.0
      %1050 = vmatpush2.msra.mxu0 0.0
      %1051 = vmatprep.subr.mxu0 0.0
      %1052 = vmatpush2.msra.mxu0 0.0
      %1053 = vmatprep.subr.mxu0 0.0
      %1054 = vmatpush2.msra.mxu0 0.0
      %1055 = vmatprep.subr.mxu0 0.0
      %1056 = vmatpush2.msra.mxu0 0.0
      %1057 = vmatprep.subr.mxu0 0.0
      %1058 = vmatpush2.msra.mxu0 0.0
      %1059 = vmatprep.subr.mxu0 0.0
      %1060 = vmatpush2.msra.mxu0 0.0
      %1061 = vmatprep.subr.mxu0 0.0
      %1062 = vmatpush2.msra.mxu0 0.0
      %1063 = vmatprep.subr.mxu0 0.0
      %1064 = vmatpush2.msra.mxu0 0.0
      %1065 = vmatprep.subr.mxu0 0.0
      %1066 = vmatpush2.msra.mxu0 0.0
      %1067 = vmatprep.subr.mxu0 0.0
      %1068 = vmatpush2.msra.mxu0 0.0
      %1069 = vmatprep.subr.mxu0 0.0
      %1070 = vmatpush2.msra.mxu0 0.0
      %1071 = vmatprep.subr.mxu0 0.0
      %1072 = vmatpush2.msra.mxu0 0.0
      %1073 = vmatprep.subr.mxu0 0.0
      %1074 = vmatpush2.msra.mxu0 0.0
      %1075 = vmatprep.subr.mxu0 0.0
      %1076 = vmatpush2.msra.mxu0 0.0
      %1077 = vmatprep.mubr.f32.mxu0 0.0
      %1078 = vmatmul.mubr.f32.gmra.mxu0 %v995
      %v1079 = vpop.f32.mrf.mxu0
      %v1080 = vadd.f32 %v1012, %v1079
      %v1081 = vpop.f32.mrf.mxu0
      %1082 = vdwg.mxu0
      %vm1083 = vcmask 49152
      %v1084 = vsel %vm1083, %v1080, -inf
      %1085 = vmax.xlane.f32.xlu0 %v1084
      %v1086 = vpop.xlane.xlu0 %1085
      %v1087 = vsub.f32 %v1080, %v1086
      %v1088 = vmul.f32 %v1087, 1.442695
      %v1089 = vpow.pop %v1088
      %v1090 = vsel %vm1083, %v1089, 0.0
      %1091 = vadd.xlane.f32.xlu0 %v1090
      %v1092 = vpop.xlane.xlu0 %1091
      %v1093 = vlog2.pop %v1092
      %v1094 = vmul.f32 %v1093, 0.6931472
      %v1095 = vadd.f32 %v1086, %v1094
      %v1096 = vsub.f32 %v1080, %v1095
      %vm1097 = vcmask 56320
      %v1098 = vsel %vm1097, %v1096, %v1080
      %vm1099 = vcmask 57344
      %1100 = vst.msk [vmem:[%s379] sm:$0x1] %vm1099, %v1098
      %p1101 = scmp.lt.s32.totalorder %s22, 1
      %s1102 = scalar_select %p1101, %s22, 1
      %s1103 = scalar_lea.vmem %s11, %s1102
      // Predicated region
      $region65: #{communication_net_forward.1} parent=63 // pred_check
        %p1104 = pneg %p276
      $region66: #{communication_net_forward.1} parent=63 // pred_check_branch
        %1106 = sbr.rel (%p1104) target = $region68
      $region67: #{communication_net_forward.1} parent=63 // pred_region
        _
      $region68: #{communication_net_forward.1} parent=63 // pred_fallthru
        _
    $region64: #{communication_net_forward.1} parent=5 // pred_fallthru
      _
    %p1107 = scmp.le.s32.totalorder 2, %s17
    // Predicated region
    $region69: #{communication_net_forward.1} parent=5 // pred_check
      %p1108 = pneg %p1107
    $region70: #{communication_net_forward.1} parent=5 // pred_check_branch
      %1110 = sbr.rel (%p1108) target = $region72
    $region71: #{communication_net_forward.1} parent=5 // pred_region
      %s1111 = ssub.s32 %s17, 2
      // Predicated region
      $region73: #{communication_net_forward.1} parent=71 // pred_check
        %p1112 = pneg %p282
      $region74: #{communication_net_forward.1} parent=71 // pred_check_branch
        %1114 = sbr.rel (%p1112) target = $region76
      $region75: #{communication_net_forward.1} parent=71 // pred_region
        %p1115 = scmp.lt.s32.totalorder %s23, 1
        %s1116 = scalar_select %p1115, %s23, 1
        %s1117 = scalar_lea.vmem %s11, %s1116
      $region76: #{communication_net_forward.1} parent=71 // pred_fallthru
        _
    $region72: #{communication_net_forward.1} parent=5 // pred_fallthru
      _
  $region6: #{communication_net_forward.1} parent=0 // loop_footer
    %s21 = sadd.s32 1, %s17
  $region7: #{communication_net_forward.1} parent=0 // loop_footer_branch
    %16 = sbr.rel target = $region3
  $region8: #{communication_net_forward.1} parent=0 // loop_exit
    _

</llo_original>
